<compile_context>
chip_gen: v7x
topology: tpu7x:2x2x1
jax: 0.10.0
libtpu: 0.0.40
codegen_flags: <defaults>
</compile_context>

<pallas_src>
import math

import jax
import jax.numpy as jnp
import numpy as np
from jax import lax
from jax.experimental import pallas as pl
from jax.experimental.pallas import tpu as pltpu  # noqa: F401  (TPU backend)

# ---------------- model hyper-parameters (synthetic, small) ----------------
VOCAB = 128     # vocab size
HID = 32        # hidden size
NH = 4          # num attention heads
HD = HID // NH  # head dim
INTER = 64      # MLP intermediate size
SEQ = 8         # sequence length
NLAYERS = 2     # number of decoder layers
EPS = 1e-6      # rmsnorm eps
ROPE_BASE = 10000.0
NEG_INF = -1e30  # large finite negative for the additive causal mask


# ------------------------------ fused kernel --------------------------------
def fused_llama_kernel(ids_ref, tab_ref, cos_ref, sin_ref, headsel_ref, mask_ref,
                       wqk_ref, wvo_ref, wgu_ref, wd_ref, ln1_ref, ln2_ref,
                       out_ref):
    """Whole forward pass (embedding + NLAYERS decoder layers) in one body."""
    # ---- embed_tokens: one-hot (S, V) @ table (V, H) on the MXU ----
    ids = ids_ref[...]                                              # (S, 1) int32
    iota = lax.broadcasted_iota(jnp.int32, (SEQ, VOCAB), 1)
    onehot = (iota == ids).astype(jnp.bfloat16)                     # exact 0/1
    x = jnp.dot(onehot, tab_ref[...],
                preferred_element_type=jnp.float32)                 # (S, H) f32

    cos = cos_ref[...]                                              # (S, H)
    sin = sin_ref[...]
    headsel = headsel_ref[...]                                      # (NH*S, H) 0/1
    mask_t = mask_ref[...]                                          # (NH*S, S)

    for l in range(NLAYERS):                                        # static unroll
        wqk = wqk_ref[l]                                            # (H, 4H)  bf16
        wvo = wvo_ref[l]                                            # (H, NH*H) bf16
        wgu = wgu_ref[l]                                            # (H, 2*I) bf16
        wd = wd_ref[l]                                              # (I, H)   bf16
        ln1 = ln1_ref[l]                                            # (1, H)   f32
        ln2 = ln2_ref[l]

        # ---- input RMSNorm (f32 elementwise) ----
        h = x * lax.rsqrt(jnp.mean(x * x, axis=-1, keepdims=True) + EPS) * ln1
        hb = h.astype(jnp.bfloat16)

        # ---- fused q/k projection with folded rotate-half (ONE matmul) ----
        proj = jnp.dot(hb, wqk, preferred_element_type=jnp.float32)  # (S, 4H)
        q = proj[:, 0 * HID:1 * HID] * cos + proj[:, 1 * HID:2 * HID] * sin
        k = proj[:, 2 * HID:3 * HID] * cos + proj[:, 3 * HID:4 * HID] * sin

        # ---- fused value @ out-proj (ONE matmul): vo[:, h*H:(h+1)*H] = v_h @ wo_h
        vo = jnp.dot(hb, wvo, preferred_element_type=jnp.float32)    # (S, NH*H)

        # ---- all-head scores with ONE matmul, softmax batched over heads ----
        # a[h*S+i, d] = q[i, d] if d belongs to head h else 0
        a = (jnp.concatenate([q] * NH, axis=0) * headsel).astype(jnp.bfloat16)
        sc = lax.dot_general(a, k.astype(jnp.bfloat16),
                             (((1,), (1,)), ((), ())),
                             preferred_element_type=jnp.float32)     # (NH*S, S)
        sc = sc + mask_t
        m = jnp.max(sc, axis=-1, keepdims=True)
        e = jnp.exp(sc - m)
        p = e * pl.reciprocal(jnp.sum(e, axis=-1, keepdims=True), approx=True)

        # ---- per-head p @ (v_h @ wo_h), accumulated into (S, H) ----
        attn = jnp.zeros((SEQ, HID), jnp.float32)
        for hh in range(NH):
            attn = attn + jnp.dot(p[hh * SEQ:(hh + 1) * SEQ, :],
                                  vo[:, hh * HID:(hh + 1) * HID],
                                  preferred_element_type=jnp.float32)
        x = x + attn                                                 # residual 1

        # ---- post-attention RMSNorm + SwiGLU MLP (gate/up fused) ----
        h2 = x * lax.rsqrt(jnp.mean(x * x, axis=-1, keepdims=True) + EPS) * ln2
        gu = jnp.dot(h2.astype(jnp.bfloat16), wgu,
                     preferred_element_type=jnp.float32)             # (S, 2*I)
        g = gu[:, :INTER]
        u = gu[:, INTER:]
        act = (g * jax.nn.sigmoid(g)) * u                            # SiLU * up
        mlp = jnp.dot(act.astype(jnp.bfloat16), wd,
                      preferred_element_type=jnp.float32)            # (S, H)
        x = x + mlp                                                  # residual 2

    out_ref[...] = x


# ------------------------------ wrapper --------------------------------------
@jax.jit
def llama_part1_forward(input_ids, embed_tab_bf16, cos_full, sin_full,
                        headsel, mask_t, stacked):
    # input_ids: (1, S) int32 (batch = 1, matching the module's x[0] quirk)
    ids_2d = input_ids[0].astype(jnp.int32).reshape(SEQ, 1)
    args = (ids_2d, embed_tab_bf16, cos_full, sin_full, headsel, mask_t,
            stacked["wqk"], stacked["wvo"], stacked["wgu"], stacked["wd"],
            stacked["ln1"], stacked["ln2"])
    # No grid: everything (inputs, stacked weights, output) is whole-array
    # resident in VMEM; total footprint is well under 1 MiB on all generations.
    return pl.pallas_call(
        fused_llama_kernel,
        out_shape=jax.ShapeDtypeStruct((SEQ, HID), jnp.float32),
    )(*args)


# ------------------------------ init / constants -----------------------------
def make_rope_tables(seq_len, head_dim):
    inv_freq = 1.0 / (ROPE_BASE ** (jnp.arange(0, head_dim, 2, dtype=jnp.float32)
                                    / head_dim))
    pos = jnp.arange(seq_len, dtype=jnp.float32)
    freqs = pos[:, None] * inv_freq[None, :]              # (S, HD/2)
    emb = jnp.concatenate([freqs, freqs], axis=-1)        # (S, HD)
    return jnp.cos(emb), jnp.sin(emb)


def make_rot_half_matrix():
    """R such that (q @ R) == rotate_half(q) applied independently per head."""
    R = np.zeros((HID, HID), np.float32)
    half = HD // 2
    for h in range(NH):
        lo = h * HD
        for d in range(half):
            R[lo + half + d, lo + d] = -1.0   # out[:, lo+d]      = -q[:, lo+half+d]
            R[lo + d, lo + half + d] = 1.0    # out[:, lo+half+d] = +q[:, lo+d]
    return jnp.asarray(R)


def make_head_selector():
    """(NH*S, HID) 0/1 mask: row block h keeps only head h's hidden columns."""
    row_head = np.arange(NH * SEQ) // SEQ
    col_head = np.arange(HID) // HD
    return jnp.asarray((row_head[:, None] == col_head[None, :]).astype(np.float32))


def make_additive_causal_mask_tiled():
    row = np.arange(SEQ)[:, None]
    col = np.arange(SEQ)[None, :]
    m = np.where(row >= col, 0.0, NEG_INF).astype(np.float32)   # (S, S)
    return jnp.asarray(np.tile(m, (NH, 1)))                     # (NH*S, S)


def init_params(key):
    def nrm(k, shape):
        return jax.random.normal(k, shape, dtype=jnp.float32) * 0.02

    keys = jax.random.split(key, 1 + NLAYERS * 7)
    embed = nrm(keys[0], (VOCAB, HID))
    layers = []
    ki = 1
    for _ in range(NLAYERS):
        lp = {
            "wq": nrm(keys[ki + 0], (HID, HID)),
            "wk": nrm(keys[ki + 1], (HID, HID)),
            "wv": nrm(keys[ki + 2], (HID, HID)),
            "wo": nrm(keys[ki + 3], (HID, HID)),
            "wg": nrm(keys[ki + 4], (HID, INTER)),
            "wu": nrm(keys[ki + 5], (HID, INTER)),
            "wd": nrm(keys[ki + 6], (INTER, HID)),
            "ln1": jnp.ones((1, HID), jnp.float32),
            "ln2": jnp.ones((1, HID), jnp.float32),
        }
        layers.append(lp)
        ki += 7
    return embed, layers


def build_kernel_params(layers):
    """Fold init-time constants and fuse per-layer weights into lane-dense bf16
    blocks:
      wqk = [wq/sqrt(HD) | (wq/sqrt(HD))@R | wk | wk@R]     (HID, 4*HID)
      wvo = concat_h( wv[:, h] @ wo[h, :] )                 (HID, NH*HID)
      wgu = [wg | wu]                                       (HID, 2*INTER)
    Stacked on a leading NLAYERS axis."""
    R = make_rot_half_matrix()
    scale = 1.0 / math.sqrt(HD)
    wqk, wvo, wgu, wd = [], [], [], []
    for lp in layers:
        wq_s = lp["wq"] * scale
        wqk.append(jnp.concatenate([wq_s, wq_s @ R, lp["wk"], lp["wk"] @ R], axis=1))
        vo_blocks = [lp["wv"][:, h * HD:(h + 1) * HD] @ lp["wo"][h * HD:(h + 1) * HD, :]
                     for h in range(NH)]
        wvo.append(jnp.concatenate(vo_blocks, axis=1))
        wgu.append(jnp.concatenate([lp["wg"], lp["wu"]], axis=1))
        wd.append(lp["wd"])
    return {
        "wqk": jnp.stack(wqk).astype(jnp.bfloat16),   # (L, HID, 4*HID)
        "wvo": jnp.stack(wvo).astype(jnp.bfloat16),   # (L, HID, NH*HID)
        "wgu": jnp.stack(wgu).astype(jnp.bfloat16),   # (L, HID, 2*INTER)
        "wd":  jnp.stack(wd).astype(jnp.bfloat16),    # (L, INTER, HID)
        "ln1": jnp.stack([lp["ln1"] for lp in layers]),   # (L, 1, HID) f32
        "ln2": jnp.stack([lp["ln2"] for lp in layers]),   # (L, 1, HID) f32
    }


# ------------------------------ pure-JAX reference ---------------------------
def reference_forward(input_ids, embed, layers, cos, sin):
    def rot(t):
        half = HD // 2
        return jnp.concatenate([-t[:, half:], t[:, :half]], axis=-1)

    x = embed[input_ids[0]]                                       # (S, H)
    causal = jnp.arange(SEQ)[:, None] >= jnp.arange(SEQ)[None, :]
    for lp in layers:
        h = x * lax.rsqrt(jnp.mean(x * x, -1, keepdims=True) + EPS) * lp["ln1"]
        q = h @ lp["wq"]; k = h @ lp["wk"]; v = h @ lp["wv"]
        outs = []
        for hh in range(NH):
            lo = hh * HD
            qh = q[:, lo:lo + HD] * cos + rot(q[:, lo:lo + HD]) * sin
            kh = k[:, lo:lo + HD] * cos + rot(k[:, lo:lo + HD]) * sin
            sc = (qh @ kh.T) / math.sqrt(HD)
            sc = jnp.where(causal, sc, -jnp.inf)
            p = jax.nn.softmax(sc, axis=-1)
            outs.append(p @ v[:, lo:lo + HD])
        x = x + jnp.concatenate(outs, -1) @ lp["wo"]
        h2 = x * lax.rsqrt(jnp.mean(x * x, -1, keepdims=True) + EPS) * lp["ln2"]
        g = h2 @ lp["wg"]; g = g * jax.nn.sigmoid(g)
        u = h2 @ lp["wu"]
        x = x + (g * u) @ lp["wd"]
    return x


# ------------------------------ main ------------------------------------------
if __name__ == "__main__":
    key = jax.random.PRNGKey(0)
    k_ids, k_params = jax.random.split(key)
    input_ids = jax.random.randint(k_ids, (1, SEQ), 0, VOCAB, dtype=jnp.int32)

    embed, layers = init_params(k_params)
    stacked = build_kernel_params(layers)

    cos, sin = make_rope_tables(SEQ, HD)          # (S, HD) per-head tables
    cos_full = jnp.tile(cos, (1, NH))             # (S, HID), head-contiguous
    sin_full = jnp.tile(sin, (1, NH))
    headsel = make_head_selector()                # (NH*S, HID) block-diag 0/1
    mask_t = make_additive_causal_mask_tiled()    # (NH*S, S) additive mask
    embed_bf16 = embed.astype(jnp.bfloat16)

    out = llama_part1_forward(input_ids, embed_bf16, cos_full, sin_full,
                              headsel, mask_t, stacked)
    jax.block_until_ready(out)

    assert out.shape == (SEQ, HID)
    assert bool(jnp.all(jnp.isfinite(out)))

    # cross-check against a pure-JAX f32 reference of the original module math
    # (tolerance covers bf16 matmul operands + approx softmax reciprocal)
    ref = reference_forward(input_ids, embed, layers, cos, sin)
    max_err = float(jnp.max(jnp.abs(out - ref)))
    assert bool(jnp.allclose(out, ref, rtol=2e-2, atol=5e-3)), max_err

    print("KERNEL_OK")
</pallas_src>

<mosaic_0001>
module attributes {stable_mosaic.version = 11 : i64} {
  func.func @fused_llama_kernel(%arg0: memref<8x1xi32, #tpu.memory_space<vmem>>, %arg1: memref<128x32xbf16, #tpu.memory_space<vmem>>, %arg2: memref<8x32xf32, #tpu.memory_space<vmem>>, %arg3: memref<8x32xf32, #tpu.memory_space<vmem>>, %arg4: memref<32x32xf32, #tpu.memory_space<vmem>>, %arg5: memref<32x8xf32, #tpu.memory_space<vmem>>, %arg6: memref<2x32x128xbf16, #tpu.memory_space<vmem>>, %arg7: memref<2x32x128xbf16, #tpu.memory_space<vmem>>, %arg8: memref<2x32x128xbf16, #tpu.memory_space<vmem>>, %arg9: memref<2x64x32xbf16, #tpu.memory_space<vmem>>, %arg10: memref<2x1x32xf32, #tpu.memory_space<vmem>>, %arg11: memref<2x1x32xf32, #tpu.memory_space<vmem>>, %arg12: memref<8x32xf32, #tpu.memory_space<vmem>>) attributes {dimension_semantics = [], scalar_prefetch = 0 : i64, scratch_operands = 0 : i64, tpu.core_type = #tpu.core_type<tc>} {
    %c0 = arith.constant 0 : index
    %c0_0 = arith.constant 0 : index
    %0 = vector.load %arg0[%c0, %c0_0] : memref<8x1xi32, #tpu.memory_space<vmem>>, vector<8x1xi32>
    %1 = tpu.iota {dimensions = array<i32: 1>} : vector<8x128xi32>
    %2 = vector.broadcast %0 : vector<8x1xi32> to vector<8x128xi32>
    %3 = arith.cmpi eq, %1, %2 : vector<8x128xi32>
    %4 = arith.extui %3 : vector<8x128xi1> to vector<8x128xi32>
    %5 = arith.sitofp %4 : vector<8x128xi32> to vector<8x128xf32>
    %6 = arith.truncf %5 : vector<8x128xf32> to vector<8x128xbf16>
    %c0_1 = arith.constant 0 : index
    %c0_2 = arith.constant 0 : index
    %7 = vector.load %arg1[%c0_1, %c0_2] : memref<128x32xbf16, #tpu.memory_space<vmem>>, vector<128x32xbf16>
    %cst = arith.constant dense<0.000000e+00> : vector<8x32xf32>
    %8 = tpu.matmul %6, %7, %cst {dimension_numbers = #tpu.dot_dimension_numbers<[1], [0], [0], [1], [0, 0, 1, 1], [], []>} : vector<8x128xbf16>, vector<128x32xbf16>, vector<8x32xf32> -> vector<8x32xf32>
    %c0_3 = arith.constant 0 : index
    %c0_4 = arith.constant 0 : index
    %9 = vector.load %arg2[%c0_3, %c0_4] : memref<8x32xf32, #tpu.memory_space<vmem>>, vector<8x32xf32>
    %c0_5 = arith.constant 0 : index
    %c0_6 = arith.constant 0 : index
    %10 = vector.load %arg3[%c0_5, %c0_6] : memref<8x32xf32, #tpu.memory_space<vmem>>, vector<8x32xf32>
    %c0_7 = arith.constant 0 : index
    %c0_8 = arith.constant 0 : index
    %11 = vector.load %arg4[%c0_7, %c0_8] : memref<32x32xf32, #tpu.memory_space<vmem>>, vector<32x32xf32>
    %c0_9 = arith.constant 0 : index
    %c0_10 = arith.constant 0 : index
    %12 = vector.load %arg5[%c0_9, %c0_10] : memref<32x8xf32, #tpu.memory_space<vmem>>, vector<32x8xf32>
    %c0_11 = arith.constant 0 : index
    %c0_12 = arith.constant 0 : index
    %c0_13 = arith.constant 0 : index
    %13 = vector.load %arg6[%c0_11, %c0_12, %c0_13] : memref<2x32x128xbf16, #tpu.memory_space<vmem>>, vector<1x32x128xbf16>
    %14 = vector.shape_cast %13 : vector<1x32x128xbf16> to vector<32x128xbf16>
    %c0_14 = arith.constant 0 : index
    %c0_15 = arith.constant 0 : index
    %c0_16 = arith.constant 0 : index
    %15 = vector.load %arg7[%c0_14, %c0_15, %c0_16] : memref<2x32x128xbf16, #tpu.memory_space<vmem>>, vector<1x32x128xbf16>
    %16 = vector.shape_cast %15 : vector<1x32x128xbf16> to vector<32x128xbf16>
    %c0_17 = arith.constant 0 : index
    %c0_18 = arith.constant 0 : index
    %c0_19 = arith.constant 0 : index
    %17 = vector.load %arg8[%c0_17, %c0_18, %c0_19] : memref<2x32x128xbf16, #tpu.memory_space<vmem>>, vector<1x32x128xbf16>
    %18 = vector.shape_cast %17 : vector<1x32x128xbf16> to vector<32x128xbf16>
    %c0_20 = arith.constant 0 : index
    %c0_21 = arith.constant 0 : index
    %c0_22 = arith.constant 0 : index
    %19 = vector.load %arg9[%c0_20, %c0_21, %c0_22] : memref<2x64x32xbf16, #tpu.memory_space<vmem>>, vector<1x64x32xbf16>
    %20 = vector.shape_cast %19 : vector<1x64x32xbf16> to vector<64x32xbf16>
    %c0_23 = arith.constant 0 : index
    %c0_24 = arith.constant 0 : index
    %c0_25 = arith.constant 0 : index
    %21 = vector.load %arg10[%c0_23, %c0_24, %c0_25] : memref<2x1x32xf32, #tpu.memory_space<vmem>>, vector<1x1x32xf32>
    %22 = vector.shape_cast %21 : vector<1x1x32xf32> to vector<1x32xf32>
    %c0_26 = arith.constant 0 : index
    %c0_27 = arith.constant 0 : index
    %c0_28 = arith.constant 0 : index
    %23 = vector.load %arg11[%c0_26, %c0_27, %c0_28] : memref<2x1x32xf32, #tpu.memory_space<vmem>>, vector<1x1x32xf32>
    %24 = vector.shape_cast %23 : vector<1x1x32xf32> to vector<1x32xf32>
    %25 = arith.mulf %8, %8 : vector<8x32xf32>
    %cst_29 = arith.constant dense<0.000000e+00> : vector<8xf32>
    %26 = vector.multi_reduction <add>, %25, %cst_29 [1] : vector<8x32xf32> to vector<8xf32>
    %27 = vector.shape_cast %26 : vector<8xf32> to vector<8x1xf32>
    %cst_30 = arith.constant 3.200000e+01 : f32
    %28 = vector.broadcast %cst_30 : f32 to vector<8x1xf32>
    %29 = arith.divf %27, %28 : vector<8x1xf32>
    %cst_31 = arith.constant 9.99999997E-7 : f32
    %30 = vector.broadcast %cst_31 : f32 to vector<8x1xf32>
    %31 = arith.addf %29, %30 : vector<8x1xf32>
    %32 = math.rsqrt %31 : vector<8x1xf32>
    %33 = vector.broadcast %32 : vector<8x1xf32> to vector<8x32xf32>
    %34 = arith.mulf %8, %33 : vector<8x32xf32>
    %35 = vector.broadcast %22 : vector<1x32xf32> to vector<8x32xf32>
    %36 = arith.mulf %34, %35 : vector<8x32xf32>
    %37 = arith.truncf %36 : vector<8x32xf32> to vector<8x32xbf16>
    %cst_32 = arith.constant dense<0.000000e+00> : vector<8x128xf32>
    %38 = tpu.matmul %37, %14, %cst_32 {dimension_numbers = #tpu.dot_dimension_numbers<[1], [0], [0], [1], [0, 0, 1, 1], [], []>} : vector<8x32xbf16>, vector<32x128xbf16>, vector<8x128xf32> -> vector<8x128xf32>
    %39 = vector.extract_strided_slice %38 {offsets = [0, 0], sizes = [8, 32], strides = [1, 1]} : vector<8x128xf32> to vector<8x32xf32>
    %40 = arith.mulf %39, %9 : vector<8x32xf32>
    %41 = vector.extract_strided_slice %38 {offsets = [0, 32], sizes = [8, 32], strides = [1, 1]} : vector<8x128xf32> to vector<8x32xf32>
    %42 = arith.mulf %41, %10 : vector<8x32xf32>
    %43 = arith.addf %40, %42 : vector<8x32xf32>
    %44 = vector.extract_strided_slice %38 {offsets = [0, 64], sizes = [8, 32], strides = [1, 1]} : vector<8x128xf32> to vector<8x32xf32>
    %45 = arith.mulf %44, %9 : vector<8x32xf32>
    %46 = vector.extract_strided_slice %38 {offsets = [0, 96], sizes = [8, 32], strides = [1, 1]} : vector<8x128xf32> to vector<8x32xf32>
    %47 = arith.mulf %46, %10 : vector<8x32xf32>
    %48 = arith.addf %45, %47 : vector<8x32xf32>
    %cst_33 = arith.constant dense<0.000000e+00> : vector<8x128xf32>
    %49 = tpu.matmul %37, %16, %cst_33 {dimension_numbers = #tpu.dot_dimension_numbers<[1], [0], [0], [1], [0, 0, 1, 1], [], []>} : vector<8x32xbf16>, vector<32x128xbf16>, vector<8x128xf32> -> vector<8x128xf32>
    %50 = tpu.concatenate %43, %43, %43, %43 in 0 : vector<8x32xf32>, vector<8x32xf32>, vector<8x32xf32>, vector<8x32xf32> -> vector<32x32xf32>
    %51 = arith.mulf %50, %11 : vector<32x32xf32>
    %52 = arith.truncf %51 : vector<32x32xf32> to vector<32x32xbf16>
    %53 = arith.truncf %48 : vector<8x32xf32> to vector<8x32xbf16>
    %cst_34 = arith.constant dense<0.000000e+00> : vector<32x8xf32>
    %54 = tpu.matmul %52, %53, %cst_34 {dimension_numbers = #tpu.dot_dimension_numbers<[1], [1], [0], [0], [0, 0, 1, 0], [], []>} : vector<32x32xbf16>, vector<8x32xbf16>, vector<32x8xf32> -> vector<32x8xf32>
    %55 = arith.addf %54, %12 : vector<32x8xf32>
    %cst_35 = arith.constant dense<0xFF800000> : vector<32xf32>
    %56 = vector.multi_reduction <maximumf>, %55, %cst_35 [1] : vector<32x8xf32> to vector<32xf32>
    %57 = vector.shape_cast %56 : vector<32xf32> to vector<32x1xf32>
    %58 = vector.broadcast %57 : vector<32x1xf32> to vector<32x8xf32>
    %59 = arith.subf %55, %58 : vector<32x8xf32>
    %60 = math.exp %59 : vector<32x8xf32>
    %cst_36 = arith.constant dense<0.000000e+00> : vector<32xf32>
    %61 = vector.multi_reduction <add>, %60, %cst_36 [1] : vector<32x8xf32> to vector<32xf32>
    %62 = vector.shape_cast %61 : vector<32xf32> to vector<32x1xf32>
    %63 = tpu.reciprocal %62 {approx = true} : vector<32x1xf32> -> vector<32x1xf32>
    %64 = vector.broadcast %63 : vector<32x1xf32> to vector<32x8xf32>
    %65 = arith.mulf %60, %64 : vector<32x8xf32>
    %cst_37 = arith.constant 0.000000e+00 : f32
    %66 = vector.broadcast %cst_37 : f32 to vector<8x32xf32>
    %67 = vector.extract_strided_slice %65 {offsets = [0, 0], sizes = [8, 8], strides = [1, 1]} : vector<32x8xf32> to vector<8x8xf32>
    %68 = vector.extract_strided_slice %49 {offsets = [0, 0], sizes = [8, 32], strides = [1, 1]} : vector<8x128xf32> to vector<8x32xf32>
    %cst_38 = arith.constant dense<0.000000e+00> : vector<8x32xf32>
    %69 = tpu.matmul %67, %68, %cst_38 {dimension_numbers = #tpu.dot_dimension_numbers<[1], [0], [0], [1], [0, 0, 1, 1], [], []>} : vector<8x8xf32>, vector<8x32xf32>, vector<8x32xf32> -> vector<8x32xf32>
    %70 = arith.addf %66, %69 : vector<8x32xf32>
    %71 = vector.extract_strided_slice %65 {offsets = [8, 0], sizes = [8, 8], strides = [1, 1]} : vector<32x8xf32> to vector<8x8xf32>
    %72 = vector.extract_strided_slice %49 {offsets = [0, 32], sizes = [8, 32], strides = [1, 1]} : vector<8x128xf32> to vector<8x32xf32>
    %cst_39 = arith.constant dense<0.000000e+00> : vector<8x32xf32>
    %73 = tpu.matmul %71, %72, %cst_39 {dimension_numbers = #tpu.dot_dimension_numbers<[1], [0], [0], [1], [0, 0, 1, 1], [], []>} : vector<8x8xf32>, vector<8x32xf32>, vector<8x32xf32> -> vector<8x32xf32>
    %74 = arith.addf %70, %73 : vector<8x32xf32>
    %75 = vector.extract_strided_slice %65 {offsets = [16, 0], sizes = [8, 8], strides = [1, 1]} : vector<32x8xf32> to vector<8x8xf32>
    %76 = vector.extract_strided_slice %49 {offsets = [0, 64], sizes = [8, 32], strides = [1, 1]} : vector<8x128xf32> to vector<8x32xf32>
    %cst_40 = arith.constant dense<0.000000e+00> : vector<8x32xf32>
    %77 = tpu.matmul %75, %76, %cst_40 {dimension_numbers = #tpu.dot_dimension_numbers<[1], [0], [0], [1], [0, 0, 1, 1], [], []>} : vector<8x8xf32>, vector<8x32xf32>, vector<8x32xf32> -> vector<8x32xf32>
    %78 = arith.addf %74, %77 : vector<8x32xf32>
    %79 = vector.extract_strided_slice %65 {offsets = [24, 0], sizes = [8, 8], strides = [1, 1]} : vector<32x8xf32> to vector<8x8xf32>
    %80 = vector.extract_strided_slice %49 {offsets = [0, 96], sizes = [8, 32], strides = [1, 1]} : vector<8x128xf32> to vector<8x32xf32>
    %cst_41 = arith.constant dense<0.000000e+00> : vector<8x32xf32>
    %81 = tpu.matmul %79, %80, %cst_41 {dimension_numbers = #tpu.dot_dimension_numbers<[1], [0], [0], [1], [0, 0, 1, 1], [], []>} : vector<8x8xf32>, vector<8x32xf32>, vector<8x32xf32> -> vector<8x32xf32>
    %82 = arith.addf %78, %81 : vector<8x32xf32>
    %83 = arith.addf %8, %82 : vector<8x32xf32>
    %84 = arith.mulf %83, %83 : vector<8x32xf32>
    %cst_42 = arith.constant dense<0.000000e+00> : vector<8xf32>
    %85 = vector.multi_reduction <add>, %84, %cst_42 [1] : vector<8x32xf32> to vector<8xf32>
    %86 = vector.shape_cast %85 : vector<8xf32> to vector<8x1xf32>
    %cst_43 = arith.constant 3.200000e+01 : f32
    %87 = vector.broadcast %cst_43 : f32 to vector<8x1xf32>
    %88 = arith.divf %86, %87 : vector<8x1xf32>
    %cst_44 = arith.constant 9.99999997E-7 : f32
    %89 = vector.broadcast %cst_44 : f32 to vector<8x1xf32>
    %90 = arith.addf %88, %89 : vector<8x1xf32>
    %91 = math.rsqrt %90 : vector<8x1xf32>
    %92 = vector.broadcast %91 : vector<8x1xf32> to vector<8x32xf32>
    %93 = arith.mulf %83, %92 : vector<8x32xf32>
    %94 = vector.broadcast %24 : vector<1x32xf32> to vector<8x32xf32>
    %95 = arith.mulf %93, %94 : vector<8x32xf32>
    %96 = arith.truncf %95 : vector<8x32xf32> to vector<8x32xbf16>
    %cst_45 = arith.constant dense<0.000000e+00> : vector<8x128xf32>
    %97 = tpu.matmul %96, %18, %cst_45 {dimension_numbers = #tpu.dot_dimension_numbers<[1], [0], [0], [1], [0, 0, 1, 1], [], []>} : vector<8x32xbf16>, vector<32x128xbf16>, vector<8x128xf32> -> vector<8x128xf32>
    %98 = vector.extract_strided_slice %97 {offsets = [0, 0], sizes = [8, 64], strides = [1, 1]} : vector<8x128xf32> to vector<8x64xf32>
    %99 = vector.extract_strided_slice %97 {offsets = [0, 64], sizes = [8, 64], strides = [1, 1]} : vector<8x128xf32> to vector<8x64xf32>
    %100 = arith.negf %98 : vector<8x64xf32>
    %101 = math.exp %100 : vector<8x64xf32>
    %cst_46 = arith.constant 1.000000e+00 : f32
    %102 = vector.broadcast %cst_46 : f32 to vector<8x64xf32>
    %103 = arith.addf %102, %101 : vector<8x64xf32>
    %104 = arith.divf %102, %103 : vector<8x64xf32>
    %105 = arith.mulf %98, %104 : vector<8x64xf32>
    %106 = arith.mulf %105, %99 : vector<8x64xf32>
    %107 = arith.truncf %106 : vector<8x64xf32> to vector<8x64xbf16>
    %cst_47 = arith.constant dense<0.000000e+00> : vector<8x32xf32>
    %108 = tpu.matmul %107, %20, %cst_47 {dimension_numbers = #tpu.dot_dimension_numbers<[1], [0], [0], [1], [0, 0, 1, 1], [], []>} : vector<8x64xbf16>, vector<64x32xbf16>, vector<8x32xf32> -> vector<8x32xf32>
    %109 = arith.addf %83, %108 : vector<8x32xf32>
    %c1 = arith.constant 1 : index
    %c0_48 = arith.constant 0 : index
    %c0_49 = arith.constant 0 : index
    %110 = vector.load %arg6[%c1, %c0_48, %c0_49] : memref<2x32x128xbf16, #tpu.memory_space<vmem>>, vector<1x32x128xbf16>
    %111 = vector.shape_cast %110 : vector<1x32x128xbf16> to vector<32x128xbf16>
    %c1_50 = arith.constant 1 : index
    %c0_51 = arith.constant 0 : index
    %c0_52 = arith.constant 0 : index
    %112 = vector.load %arg7[%c1_50, %c0_51, %c0_52] : memref<2x32x128xbf16, #tpu.memory_space<vmem>>, vector<1x32x128xbf16>
    %113 = vector.shape_cast %112 : vector<1x32x128xbf16> to vector<32x128xbf16>
    %c1_53 = arith.constant 1 : index
    %c0_54 = arith.constant 0 : index
    %c0_55 = arith.constant 0 : index
    %114 = vector.load %arg8[%c1_53, %c0_54, %c0_55] : memref<2x32x128xbf16, #tpu.memory_space<vmem>>, vector<1x32x128xbf16>
    %115 = vector.shape_cast %114 : vector<1x32x128xbf16> to vector<32x128xbf16>
    %c1_56 = arith.constant 1 : index
    %c0_57 = arith.constant 0 : index
    %c0_58 = arith.constant 0 : index
    %116 = vector.load %arg9[%c1_56, %c0_57, %c0_58] : memref<2x64x32xbf16, #tpu.memory_space<vmem>>, vector<1x64x32xbf16>
    %117 = vector.shape_cast %116 : vector<1x64x32xbf16> to vector<64x32xbf16>
    %c1_59 = arith.constant 1 : index
    %c0_60 = arith.constant 0 : index
    %c0_61 = arith.constant 0 : index
    %118 = vector.load %arg10[%c1_59, %c0_60, %c0_61] : memref<2x1x32xf32, #tpu.memory_space<vmem>>, vector<1x1x32xf32>
    %119 = vector.shape_cast %118 : vector<1x1x32xf32> to vector<1x32xf32>
    %c1_62 = arith.constant 1 : index
    %c0_63 = arith.constant 0 : index
    %c0_64 = arith.constant 0 : index
    %120 = vector.load %arg11[%c1_62, %c0_63, %c0_64] : memref<2x1x32xf32, #tpu.memory_space<vmem>>, vector<1x1x32xf32>
    %121 = vector.shape_cast %120 : vector<1x1x32xf32> to vector<1x32xf32>
    %122 = arith.mulf %109, %109 : vector<8x32xf32>
    %cst_65 = arith.constant dense<0.000000e+00> : vector<8xf32>
    %123 = vector.multi_reduction <add>, %122, %cst_65 [1] : vector<8x32xf32> to vector<8xf32>
    %124 = vector.shape_cast %123 : vector<8xf32> to vector<8x1xf32>
    %cst_66 = arith.constant 3.200000e+01 : f32
    %125 = vector.broadcast %cst_66 : f32 to vector<8x1xf32>
    %126 = arith.divf %124, %125 : vector<8x1xf32>
    %cst_67 = arith.constant 9.99999997E-7 : f32
    %127 = vector.broadcast %cst_67 : f32 to vector<8x1xf32>
    %128 = arith.addf %126, %127 : vector<8x1xf32>
    %129 = math.rsqrt %128 : vector<8x1xf32>
    %130 = vector.broadcast %129 : vector<8x1xf32> to vector<8x32xf32>
    %131 = arith.mulf %109, %130 : vector<8x32xf32>
    %132 = vector.broadcast %119 : vector<1x32xf32> to vector<8x32xf32>
    %133 = arith.mulf %131, %132 : vector<8x32xf32>
    %134 = arith.truncf %133 : vector<8x32xf32> to vector<8x32xbf16>
    %cst_68 = arith.constant dense<0.000000e+00> : vector<8x128xf32>
    %135 = tpu.matmul %134, %111, %cst_68 {dimension_numbers = #tpu.dot_dimension_numbers<[1], [0], [0], [1], [0, 0, 1, 1], [], []>} : vector<8x32xbf16>, vector<32x128xbf16>, vector<8x128xf32> -> vector<8x128xf32>
    %136 = vector.extract_strided_slice %135 {offsets = [0, 0], sizes = [8, 32], strides = [1, 1]} : vector<8x128xf32> to vector<8x32xf32>
    %137 = arith.mulf %136, %9 : vector<8x32xf32>
    %138 = vector.extract_strided_slice %135 {offsets = [0, 32], sizes = [8, 32], strides = [1, 1]} : vector<8x128xf32> to vector<8x32xf32>
    %139 = arith.mulf %138, %10 : vector<8x32xf32>
    %140 = arith.addf %137, %139 : vector<8x32xf32>
    %141 = vector.extract_strided_slice %135 {offsets = [0, 64], sizes = [8, 32], strides = [1, 1]} : vector<8x128xf32> to vector<8x32xf32>
    %142 = arith.mulf %141, %9 : vector<8x32xf32>
    %143 = vector.extract_strided_slice %135 {offsets = [0, 96], sizes = [8, 32], strides = [1, 1]} : vector<8x128xf32> to vector<8x32xf32>
    %144 = arith.mulf %143, %10 : vector<8x32xf32>
    %145 = arith.addf %142, %144 : vector<8x32xf32>
    %cst_69 = arith.constant dense<0.000000e+00> : vector<8x128xf32>
    %146 = tpu.matmul %134, %113, %cst_69 {dimension_numbers = #tpu.dot_dimension_numbers<[1], [0], [0], [1], [0, 0, 1, 1], [], []>} : vector<8x32xbf16>, vector<32x128xbf16>, vector<8x128xf32> -> vector<8x128xf32>
    %147 = tpu.concatenate %140, %140, %140, %140 in 0 : vector<8x32xf32>, vector<8x32xf32>, vector<8x32xf32>, vector<8x32xf32> -> vector<32x32xf32>
    %148 = arith.mulf %147, %11 : vector<32x32xf32>
    %149 = arith.truncf %148 : vector<32x32xf32> to vector<32x32xbf16>
    %150 = arith.truncf %145 : vector<8x32xf32> to vector<8x32xbf16>
    %cst_70 = arith.constant dense<0.000000e+00> : vector<32x8xf32>
    %151 = tpu.matmul %149, %150, %cst_70 {dimension_numbers = #tpu.dot_dimension_numbers<[1], [1], [0], [0], [0, 0, 1, 0], [], []>} : vector<32x32xbf16>, vector<8x32xbf16>, vector<32x8xf32> -> vector<32x8xf32>
    %152 = arith.addf %151, %12 : vector<32x8xf32>
    %cst_71 = arith.constant dense<0xFF800000> : vector<32xf32>
    %153 = vector.multi_reduction <maximumf>, %152, %cst_71 [1] : vector<32x8xf32> to vector<32xf32>
    %154 = vector.shape_cast %153 : vector<32xf32> to vector<32x1xf32>
    %155 = vector.broadcast %154 : vector<32x1xf32> to vector<32x8xf32>
    %156 = arith.subf %152, %155 : vector<32x8xf32>
    %157 = math.exp %156 : vector<32x8xf32>
    %cst_72 = arith.constant dense<0.000000e+00> : vector<32xf32>
    %158 = vector.multi_reduction <add>, %157, %cst_72 [1] : vector<32x8xf32> to vector<32xf32>
    %159 = vector.shape_cast %158 : vector<32xf32> to vector<32x1xf32>
    %160 = tpu.reciprocal %159 {approx = true} : vector<32x1xf32> -> vector<32x1xf32>
    %161 = vector.broadcast %160 : vector<32x1xf32> to vector<32x8xf32>
    %162 = arith.mulf %157, %161 : vector<32x8xf32>
    %cst_73 = arith.constant 0.000000e+00 : f32
    %163 = vector.broadcast %cst_73 : f32 to vector<8x32xf32>
    %164 = vector.extract_strided_slice %162 {offsets = [0, 0], sizes = [8, 8], strides = [1, 1]} : vector<32x8xf32> to vector<8x8xf32>
    %165 = vector.extract_strided_slice %146 {offsets = [0, 0], sizes = [8, 32], strides = [1, 1]} : vector<8x128xf32> to vector<8x32xf32>
    %cst_74 = arith.constant dense<0.000000e+00> : vector<8x32xf32>
    %166 = tpu.matmul %164, %165, %cst_74 {dimension_numbers = #tpu.dot_dimension_numbers<[1], [0], [0], [1], [0, 0, 1, 1], [], []>} : vector<8x8xf32>, vector<8x32xf32>, vector<8x32xf32> -> vector<8x32xf32>
    %167 = arith.addf %163, %166 : vector<8x32xf32>
    %168 = vector.extract_strided_slice %162 {offsets = [8, 0], sizes = [8, 8], strides = [1, 1]} : vector<32x8xf32> to vector<8x8xf32>
    %169 = vector.extract_strided_slice %146 {offsets = [0, 32], sizes = [8, 32], strides = [1, 1]} : vector<8x128xf32> to vector<8x32xf32>
    %cst_75 = arith.constant dense<0.000000e+00> : vector<8x32xf32>
    %170 = tpu.matmul %168, %169, %cst_75 {dimension_numbers = #tpu.dot_dimension_numbers<[1], [0], [0], [1], [0, 0, 1, 1], [], []>} : vector<8x8xf32>, vector<8x32xf32>, vector<8x32xf32> -> vector<8x32xf32>
    %171 = arith.addf %167, %170 : vector<8x32xf32>
    %172 = vector.extract_strided_slice %162 {offsets = [16, 0], sizes = [8, 8], strides = [1, 1]} : vector<32x8xf32> to vector<8x8xf32>
    %173 = vector.extract_strided_slice %146 {offsets = [0, 64], sizes = [8, 32], strides = [1, 1]} : vector<8x128xf32> to vector<8x32xf32>
    %cst_76 = arith.constant dense<0.000000e+00> : vector<8x32xf32>
    %174 = tpu.matmul %172, %173, %cst_76 {dimension_numbers = #tpu.dot_dimension_numbers<[1], [0], [0], [1], [0, 0, 1, 1], [], []>} : vector<8x8xf32>, vector<8x32xf32>, vector<8x32xf32> -> vector<8x32xf32>
    %175 = arith.addf %171, %174 : vector<8x32xf32>
    %176 = vector.extract_strided_slice %162 {offsets = [24, 0], sizes = [8, 8], strides = [1, 1]} : vector<32x8xf32> to vector<8x8xf32>
    %177 = vector.extract_strided_slice %146 {offsets = [0, 96], sizes = [8, 32], strides = [1, 1]} : vector<8x128xf32> to vector<8x32xf32>
    %cst_77 = arith.constant dense<0.000000e+00> : vector<8x32xf32>
    %178 = tpu.matmul %176, %177, %cst_77 {dimension_numbers = #tpu.dot_dimension_numbers<[1], [0], [0], [1], [0, 0, 1, 1], [], []>} : vector<8x8xf32>, vector<8x32xf32>, vector<8x32xf32> -> vector<8x32xf32>
    %179 = arith.addf %175, %178 : vector<8x32xf32>
    %180 = arith.addf %109, %179 : vector<8x32xf32>
    %181 = arith.mulf %180, %180 : vector<8x32xf32>
    %cst_78 = arith.constant dense<0.000000e+00> : vector<8xf32>
    %182 = vector.multi_reduction <add>, %181, %cst_78 [1] : vector<8x32xf32> to vector<8xf32>
    %183 = vector.shape_cast %182 : vector<8xf32> to vector<8x1xf32>
    %cst_79 = arith.constant 3.200000e+01 : f32
    %184 = vector.broadcast %cst_79 : f32 to vector<8x1xf32>
    %185 = arith.divf %183, %184 : vector<8x1xf32>
    %cst_80 = arith.constant 9.99999997E-7 : f32
    %186 = vector.broadcast %cst_80 : f32 to vector<8x1xf32>
    %187 = arith.addf %185, %186 : vector<8x1xf32>
    %188 = math.rsqrt %187 : vector<8x1xf32>
    %189 = vector.broadcast %188 : vector<8x1xf32> to vector<8x32xf32>
    %190 = arith.mulf %180, %189 : vector<8x32xf32>
    %191 = vector.broadcast %121 : vector<1x32xf32> to vector<8x32xf32>
    %192 = arith.mulf %190, %191 : vector<8x32xf32>
    %193 = arith.truncf %192 : vector<8x32xf32> to vector<8x32xbf16>
    %cst_81 = arith.constant dense<0.000000e+00> : vector<8x128xf32>
    %194 = tpu.matmul %193, %115, %cst_81 {dimension_numbers = #tpu.dot_dimension_numbers<[1], [0], [0], [1], [0, 0, 1, 1], [], []>} : vector<8x32xbf16>, vector<32x128xbf16>, vector<8x128xf32> -> vector<8x128xf32>
    %195 = vector.extract_strided_slice %194 {offsets = [0, 0], sizes = [8, 64], strides = [1, 1]} : vector<8x128xf32> to vector<8x64xf32>
    %196 = vector.extract_strided_slice %194 {offsets = [0, 64], sizes = [8, 64], strides = [1, 1]} : vector<8x128xf32> to vector<8x64xf32>
    %197 = arith.negf %195 : vector<8x64xf32>
    %198 = math.exp %197 : vector<8x64xf32>
    %cst_82 = arith.constant 1.000000e+00 : f32
    %199 = vector.broadcast %cst_82 : f32 to vector<8x64xf32>
    %200 = arith.addf %199, %198 : vector<8x64xf32>
    %201 = arith.divf %199, %200 : vector<8x64xf32>
    %202 = arith.mulf %195, %201 : vector<8x64xf32>
    %203 = arith.mulf %202, %196 : vector<8x64xf32>
    %204 = arith.truncf %203 : vector<8x64xf32> to vector<8x64xbf16>
    %cst_83 = arith.constant dense<0.000000e+00> : vector<8x32xf32>
    %205 = tpu.matmul %204, %117, %cst_83 {dimension_numbers = #tpu.dot_dimension_numbers<[1], [0], [0], [1], [0, 0, 1, 1], [], []>} : vector<8x64xbf16>, vector<64x32xbf16>, vector<8x32xf32> -> vector<8x32xf32>
    %206 = arith.addf %180, %205 : vector<8x32xf32>
    %c0_84 = arith.constant 0 : index
    %c0_85 = arith.constant 0 : index
    %207 = vector.load %arg12[%c0_84, %c0_85] : memref<8x32xf32, #tpu.memory_space<vmem>>, vector<8x32xf32>
    tpu.vector_store %arg12[%c0_84, %c0_85], %206 {strides = array<i32>} : memref<8x32xf32, #tpu.memory_space<vmem>>, vector<8x32xf32>,
    return
  }
}

</mosaic_0001>

<llo_original>
// kernel: llama_part1_forward.1
$region0: #{llama_part1_forward.1}
  #allocation0 [shape = 'u32[]', space=smem, size = 0x4, offset = 0x4, fixed_abs, tag = 'smem constant byte address 0x4 - core index']
  #allocation1 [shape = 'u32[144,128]{1,0:T(1,128)}', space=vmem, size = 0x12000, scoped, tag = 'internal scratch']
  %s0 = inlined_call_operand.vmem [shape: s32[8,1], index: 0, kind: input, shape index: {}]
  %s1 = inlined_call_operand.vmem [shape: bf16[128,32], index: 1, kind: input, shape index: {}]
  %s2 = inlined_call_operand.vmem [shape: f32[8,32], index: 2, kind: input, shape index: {}]
  %s3 = inlined_call_operand.vmem [shape: f32[8,32], index: 3, kind: input, shape index: {}]
  %s4 = inlined_call_operand.vmem [shape: f32[32,32], index: 4, kind: input, shape index: {}]
  %s5 = inlined_call_operand.vmem [shape: f32[32,8], index: 5, kind: input, shape index: {}]
  %s6 = inlined_call_operand.vmem [shape: bf16[2,32,128], index: 6, kind: input, shape index: {}]
  %s7 = inlined_call_operand.vmem [shape: bf16[2,32,128], index: 7, kind: input, shape index: {}]
  %s8 = inlined_call_operand.vmem [shape: bf16[2,32,128], index: 8, kind: input, shape index: {}]
  %s9 = inlined_call_operand.vmem [shape: bf16[2,64,32], index: 9, kind: input, shape index: {}]
  %s10 = inlined_call_operand.vmem [shape: f32[2,1,32], index: 10, kind: input, shape index: {}]
  %s11 = inlined_call_operand.vmem [shape: f32[2,1,32], index: 11, kind: input, shape index: {}]
  %s12 = inlined_call_operand.hbm [shape: f32[8,32], index: 12, kind: output, shape index: {}]
  %s13 = sld [smem:[#allocation0]]
  $region58: #{llama_part1_forward.1} parent=0
    _
  %s15 = ssub.s32 1, %s13
  %s16 = scalar_select 0, %s15, %s13
  $region1: #{llama_part1_forward.1} parent=0
    #allocation2 [shape = 'u8[4096]{0}', space=vmem, size = 0x1000, scoped, tag = 'output window, operand 0, single buffered']
    #allocation3 [shape = 's32[1]{0}', space=sflag, size = 0x4, scoped, tag = 'scoped memory for llama_part1_forward.1']
    %17 = vsyncpa [#allocation3], 0
    // Predicated region
    $region2: #{llama_part1_forward.1} parent=1 // pred_check
      _
    $region3: #{llama_part1_forward.1} parent=1 // pred_check_branch
      %19 = sbr.rel (0) target = $region5
    $region4: #{llama_part1_forward.1} parent=1 // pred_region
      _
    $region5: #{llama_part1_forward.1} parent=1 // pred_fallthru
      _
    // Predicated region
    $region6: #{llama_part1_forward.1} parent=1 // pred_check
      _
    $region7: #{llama_part1_forward.1} parent=1 // pred_check_branch
      %21 = sbr.rel (0) target = $region9
    $region8: #{llama_part1_forward.1} parent=1 // pred_region
      _
    $region9: #{llama_part1_forward.1} parent=1 // pred_fallthru
      _
    // Predicated region
    $region10: #{llama_part1_forward.1} parent=1 // pred_check
      _
    $region11: #{llama_part1_forward.1} parent=1 // pred_check_branch
      %23 = sbr.rel (0) target = $region13
    $region12: #{llama_part1_forward.1} parent=1 // pred_region
      _
    $region13: #{llama_part1_forward.1} parent=1 // pred_fallthru
      _
    // Predicated region
    $region14: #{llama_part1_forward.1} parent=1 // pred_check
      _
    $region15: #{llama_part1_forward.1} parent=1 // pred_check_branch
      %25 = sbr.rel (0) target = $region17
    $region16: #{llama_part1_forward.1} parent=1 // pred_region
      _
    $region17: #{llama_part1_forward.1} parent=1 // pred_fallthru
      _
    // Predicated region
    $region18: #{llama_part1_forward.1} parent=1 // pred_check
      _
    $region19: #{llama_part1_forward.1} parent=1 // pred_check_branch
      %27 = sbr.rel (0) target = $region21
    $region20: #{llama_part1_forward.1} parent=1 // pred_region
      _
    $region21: #{llama_part1_forward.1} parent=1 // pred_fallthru
      _
    // Predicated region
    $region22: #{llama_part1_forward.1} parent=1 // pred_check
      _
    $region23: #{llama_part1_forward.1} parent=1 // pred_check_branch
      %29 = sbr.rel (0) target = $region25
    $region24: #{llama_part1_forward.1} parent=1 // pred_region
      _
    $region25: #{llama_part1_forward.1} parent=1 // pred_fallthru
      _
    // Predicated region
    $region26: #{llama_part1_forward.1} parent=1 // pred_check
      _
    $region27: #{llama_part1_forward.1} parent=1 // pred_check_branch
      %31 = sbr.rel (0) target = $region29
    $region28: #{llama_part1_forward.1} parent=1 // pred_region
      _
    $region29: #{llama_part1_forward.1} parent=1 // pred_fallthru
      _
    // Predicated region
    $region30: #{llama_part1_forward.1} parent=1 // pred_check
      _
    $region31: #{llama_part1_forward.1} parent=1 // pred_check_branch
      %33 = sbr.rel (0) target = $region33
    $region32: #{llama_part1_forward.1} parent=1 // pred_region
      _
    $region33: #{llama_part1_forward.1} parent=1 // pred_fallthru
      _
    // Predicated region
    $region34: #{llama_part1_forward.1} parent=1 // pred_check
      _
    $region35: #{llama_part1_forward.1} parent=1 // pred_check_branch
      %35 = sbr.rel (0) target = $region37
    $region36: #{llama_part1_forward.1} parent=1 // pred_region
      _
    $region37: #{llama_part1_forward.1} parent=1 // pred_fallthru
      _
    // Predicated region
    $region38: #{llama_part1_forward.1} parent=1 // pred_check
      _
    $region39: #{llama_part1_forward.1} parent=1 // pred_check_branch
      %37 = sbr.rel (0) target = $region41
    $region40: #{llama_part1_forward.1} parent=1 // pred_region
      _
    $region41: #{llama_part1_forward.1} parent=1 // pred_fallthru
      _
    // Predicated region
    $region42: #{llama_part1_forward.1} parent=1 // pred_check
      _
    $region43: #{llama_part1_forward.1} parent=1 // pred_check_branch
      %39 = sbr.rel (0) target = $region45
    $region44: #{llama_part1_forward.1} parent=1 // pred_region
      _
    $region45: #{llama_part1_forward.1} parent=1 // pred_fallthru
      _
    // Predicated region
    $region46: #{llama_part1_forward.1} parent=1 // pred_check
      _
    $region47: #{llama_part1_forward.1} parent=1 // pred_check_branch
      %41 = sbr.rel (0) target = $region49
    $region48: #{llama_part1_forward.1} parent=1 // pred_region
      _
    $region49: #{llama_part1_forward.1} parent=1 // pred_fallthru
      _
    %v43 = vld [vmem:[%s0] sm:$0xff]
    %v44 = vlaneseq
    %v45 = vand.u32 %v44, 127
    %46 = vset.pattern.permute.xlu0 0
    %47 = vperm.xlu0 %46, %v43
    %v48 = vpop.permute.xlu0 %47
    %vm49 = vcmp.eq.s32.totalorder %v45, %v48
    %v50 = vsel %vm49, 1, 0
    %v51 = vcvt.s32.f32 %v50
    %v52 = vpack.c.bf16 %v51, %v51
    %v53 = vld [vmem:[%s1] sm:$0xf]
    %v54 = vld [vmem:[%s1 + $0x4] sm:$0xf]
    %v55 = vld [vmem:[%s1 + $0x8] sm:$0xf]
    %v56 = vld [vmem:[%s1 + $0xc] sm:$0xf]
    %v57 = vld [vmem:[%s1 + $0x10] sm:$0xf]
    %v58 = vld [vmem:[%s1 + $0x14] sm:$0xf]
    %v59 = vld [vmem:[%s1 + $0x18] sm:$0xf]
    %v60 = vld [vmem:[%s1 + $0x1c] sm:$0xf]
    %v61 = vld [vmem:[%s1 + $0x20] sm:$0xf]
    %v62 = vld [vmem:[%s1 + $0x24] sm:$0xf]
    %v63 = vld [vmem:[%s1 + $0x28] sm:$0xf]
    %v64 = vld [vmem:[%s1 + $0x2c] sm:$0xf]
    %v65 = vld [vmem:[%s1 + $0x30] sm:$0xf]
    %v66 = vld [vmem:[%s1 + $0x34] sm:$0xf]
    %v67 = vld [vmem:[%s1 + $0x38] sm:$0xf]
    %v68 = vld [vmem:[%s1 + $0x3c] sm:$0xf]
    %v85 = vunpack.c.l.b16 %v53
    %v86 = vunpack.c.l.b16 %v54
    %v87 = vunpack.c.l.b16 %v55
    %v88 = vunpack.c.l.b16 %v56
    %v89 = vunpack.c.l.b16 %v57
    %v90 = vunpack.c.l.b16 %v58
    %v91 = vunpack.c.l.b16 %v59
    %v92 = vunpack.c.l.b16 %v60
    %v93 = vunpack.c.l.b16 %v61
    %v94 = vunpack.c.l.b16 %v62
    %v95 = vunpack.c.l.b16 %v63
    %v96 = vunpack.c.l.b16 %v64
    %v97 = vunpack.c.l.b16 %v65
    %v98 = vunpack.c.l.b16 %v66
    %v99 = vunpack.c.l.b16 %v67
    %v100 = vunpack.c.l.b16 %v68
    %v101 = vpack.c.b16 %v86, %v85
    %v102 = vpack.c.b16 %v88, %v87
    %v103 = vpack.c.b16 %v90, %v89
    %v104 = vpack.c.b16 %v92, %v91
    %v105 = vpack.c.b16 %v94, %v93
    %v106 = vpack.c.b16 %v96, %v95
    %v107 = vpack.c.b16 %v98, %v97
    %v108 = vpack.c.b16 %v100, %v99
    %117 = vmatprep.subr.bf16.mxu0 0
    %118 = vmatpush1.bf16.msra.mxu0 %v101
    %119 = vmatprep.subr.bf16.mxu0 0
    %120 = vmatpush1.bf16.msra.mxu0 %v102
    %121 = vmatprep.subr.bf16.mxu0 0
    %122 = vmatpush1.bf16.msra.mxu0 %v103
    %123 = vmatprep.subr.bf16.mxu0 0
    %124 = vmatpush1.bf16.msra.mxu0 %v104
    %125 = vmatprep.subr.bf16.mxu0 0
    %126 = vmatpush1.bf16.msra.mxu0 %v105
    %127 = vmatprep.subr.bf16.mxu0 0
    %128 = vmatpush1.bf16.msra.mxu0 %v106
    %129 = vmatprep.subr.bf16.mxu0 0
    %130 = vmatpush1.bf16.msra.mxu0 %v107
    %131 = vmatprep.subr.bf16.mxu0 0
    %132 = vmatpush1.bf16.msra.mxu0 %v108
    %133 = vmatprep.subr.bf16.mxu0 0
    %134 = vmatpush1.bf16.msra.mxu0 0
    %135 = vmatprep.subr.bf16.mxu0 0
    %136 = vmatpush1.bf16.msra.mxu0 0
    %137 = vmatprep.subr.bf16.mxu0 0
    %138 = vmatpush1.bf16.msra.mxu0 0
    %139 = vmatprep.subr.bf16.mxu0 0
    %140 = vmatpush1.bf16.msra.mxu0 0
    %141 = vmatprep.subr.bf16.mxu0 0
    %142 = vmatpush1.bf16.msra.mxu0 0
    %143 = vmatprep.subr.bf16.mxu0 0
    %144 = vmatpush1.bf16.msra.mxu0 0
    %145 = vmatprep.subr.bf16.mxu0 0
    %146 = vmatpush1.bf16.msra.mxu0 0
    %147 = vmatprep.subr.bf16.mxu0 0
    %148 = vmatpush1.bf16.msra.mxu0 0
    %149 = vmatprep.mubr.bf16.mxu0 0
    %150 = vmatmul.mubr.bf16.gmra.mrb[0].mxu0 %v52
    %v151 = vpop.f32.mrb[0].mxu0
    %v152 = vadd.f32 0.0, %v151
    %v153 = vpop.f32.mrb[0].mxu0
    %v154 = vpop.f32.mrb[0].mxu0
    %v155 = vpop.f32.mrb[0].mxu0
    %156 = vdwg.mxu0
    %v157 = vld [vmem:[%s2] sm:$0xff]
    %v158 = vld [vmem:[%s3] sm:$0xff]
    %v159 = vld [vmem:[%s4] sm:$0xff]
    %v160 = vld [vmem:[%s4 + $0x8] sm:$0xff]
    %v161 = vld [vmem:[%s4 + $0x10] sm:$0xff]
    %v162 = vld [vmem:[%s4 + $0x18] sm:$0xff]
    %v163 = vld [vmem:[%s5] sm:$0xff]
    %v164 = vld [vmem:[%s5 + $0x8] sm:$0xff]
    %v165 = vld [vmem:[%s5 + $0x10] sm:$0xff]
    %v166 = vld [vmem:[%s5 + $0x18] sm:$0xff]
    %v167 = vld [vmem:[%s6] sm:$0xf]
    %v168 = vld [vmem:[%s6 + $0x4] sm:$0xf]
    %v169 = vld [vmem:[%s6 + $0x8] sm:$0xf]
    %v170 = vld [vmem:[%s6 + $0xc] sm:$0xf]
    %v171 = vld [vmem:[%s7] sm:$0xf]
    %v172 = vld [vmem:[%s7 + $0x4] sm:$0xf]
    %v173 = vld [vmem:[%s7 + $0x8] sm:$0xf]
    %v174 = vld [vmem:[%s7 + $0xc] sm:$0xf]
    %v175 = vld [vmem:[%s8] sm:$0xf]
    %v176 = vld [vmem:[%s8 + $0x4] sm:$0xf]
    %v177 = vld [vmem:[%s8 + $0x8] sm:$0xf]
    %v178 = vld [vmem:[%s8 + $0xc] sm:$0xf]
    %v179 = vld [vmem:[%s9] sm:$0xf]
    %v180 = vld [vmem:[%s9 + $0x4] sm:$0xf]
    %v181 = vld [vmem:[%s9 + $0x8] sm:$0xf]
    %v182 = vld [vmem:[%s9 + $0xc] sm:$0xf]
    %v183 = vld [vmem:[%s9 + $0x10] sm:$0xf]
    %v184 = vld [vmem:[%s9 + $0x14] sm:$0xf]
    %v185 = vld [vmem:[%s9 + $0x18] sm:$0xf]
    %v186 = vld [vmem:[%s9 + $0x1c] sm:$0xf]
    %v187 = vld [vmem:[%s10] sm:$0x1]
    %v188 = vld [vmem:[%s11] sm:$0x1]
    %v189 = vmul.f32 %v152, %v152
    %vm190 = vcmask 261120
    %v191 = vsel %vm190, %v189, 0.0
    %192 = vadd.xlane.f32.xlu0 %v191
    %v193 = vpop.xlane.xlu0 %192
    %v194 = vrcp.pop 32.0
    %v195 = vmul.f32 %v193, %v194
    %v196 = vadd.f32 %v195, 1e-06
    %v197 = vrsqrt.pop %v196
    %v198 = vmul.f32 %v152, %v197
    %v200 = vlaneseq
    %v201 = vshrl.u32 %v200, 7
    %v202 = vsub.s32 0, %v201
    %v203 = vrot.slane %v187, %v202
    %v205 = vmul.f32 %v198, %v203
    %v206 = vpack.c.bf16 %v205, %v205
    %v211 = vunpack.c.l.b16 %v167
    %v212 = vunpack.c.l.b16 %v168
    %v213 = vunpack.c.l.b16 %v169
    %v214 = vunpack.c.l.b16 %v170
    %v215 = vpack.c.b16 %v212, %v211
    %v216 = vpack.c.b16 %v214, %v213
    %v220 = vsel %vm190, %v206, 0
    %222 = vmatprep.subr.bf16.mxu0 0
    %223 = vmatpush1.bf16.msra.mxu0 %v215
    %224 = vmatprep.subr.bf16.mxu0 0
    %225 = vmatpush1.bf16.msra.mxu0 %v216
    %226 = vmatprep.subr.bf16.mxu0 0
    %227 = vmatpush1.bf16.msra.mxu0 0
    %228 = vmatprep.subr.bf16.mxu0 0
    %229 = vmatpush1.bf16.msra.mxu0 0
    %230 = vmatprep.subr.bf16.mxu0 0
    %231 = vmatpush1.bf16.msra.mxu0 0
    %232 = vmatprep.subr.bf16.mxu0 0
    %233 = vmatpush1.bf16.msra.mxu0 0
    %234 = vmatprep.subr.bf16.mxu0 0
    %235 = vmatpush1.bf16.msra.mxu0 0
    %236 = vmatprep.subr.bf16.mxu0 0
    %237 = vmatpush1.bf16.msra.mxu0 0
    %238 = vmatprep.subr.bf16.mxu0 0
    %239 = vmatpush1.bf16.msra.mxu0 0
    %240 = vmatprep.subr.bf16.mxu0 0
    %241 = vmatpush1.bf16.msra.mxu0 0
    %242 = vmatprep.subr.bf16.mxu0 0
    %243 = vmatpush1.bf16.msra.mxu0 0
    %244 = vmatprep.subr.bf16.mxu0 0
    %245 = vmatpush1.bf16.msra.mxu0 0
    %246 = vmatprep.subr.bf16.mxu0 0
    %247 = vmatpush1.bf16.msra.mxu0 0
    %248 = vmatprep.subr.bf16.mxu0 0
    %249 = vmatpush1.bf16.msra.mxu0 0
    %250 = vmatprep.subr.bf16.mxu0 0
    %251 = vmatpush1.bf16.msra.mxu0 0
    %252 = vmatprep.subr.bf16.mxu0 0
    %253 = vmatpush1.bf16.msra.mxu0 0
    %254 = vmatprep.mubr.bf16.mxu0 0
    %255 = vmatmul.mubr.bf16.gmra.mrb[0].mxu0 %v220
    %v256 = vpop.f32.mrb[0].mxu0
    %v257 = vadd.f32 0.0, %v256
    %v258 = vpop.f32.mrb[0].mxu0
    %v259 = vpop.f32.mrb[0].mxu0
    %v260 = vpop.f32.mrb[0].mxu0
    %261 = vdwg.mxu0
    %v262 = vmul.f32 %v257, %v157
    %264 = vrot.lane.b32.xlu0 %v158, 32
    %v265 = vpop.permute.xlu0 %264
    %v267 = vmul.f32 %v257, %v265
    %269 = vrot.lane.b32.xlu0 %v267, 96
    %v270 = vpop.permute.xlu0 %269
    %v272 = vadd.f32 %v262, %v270
    %274 = vrot.lane.b32.xlu0 %v157, 64
    %v275 = vpop.permute.xlu0 %274
    %v277 = vmul.f32 %v257, %v275
    %278 = vrot.lane.b32.xlu0 %v158, 96
    %v279 = vpop.permute.xlu0 %278
    %v281 = vmul.f32 %v257, %v279
    %283 = vrot.lane.b32.xlu0 %v281, 96
    %v284 = vpop.permute.xlu0 %283
    %v286 = vadd.f32 %v277, %v284
    %v291 = vunpack.c.l.b16 %v171
    %v292 = vunpack.c.l.b16 %v172
    %v293 = vunpack.c.l.b16 %v173
    %v294 = vunpack.c.l.b16 %v174
    %v295 = vpack.c.b16 %v292, %v291
    %v296 = vpack.c.b16 %v294, %v293
    %299 = vmatprep.subr.bf16.mxu0 0
    %300 = vmatpush1.bf16.msra.mxu0 %v295
    %301 = vmatprep.subr.bf16.mxu0 0
    %302 = vmatpush1.bf16.msra.mxu0 %v296
    %303 = vmatprep.subr.bf16.mxu0 0
    %304 = vmatpush1.bf16.msra.mxu0 0
    %305 = vmatprep.subr.bf16.mxu0 0
    %306 = vmatpush1.bf16.msra.mxu0 0
    %307 = vmatprep.subr.bf16.mxu0 0
    %308 = vmatpush1.bf16.msra.mxu0 0
    %309 = vmatprep.subr.bf16.mxu0 0
    %310 = vmatpush1.bf16.msra.mxu0 0
    %311 = vmatprep.subr.bf16.mxu0 0
    %312 = vmatpush1.bf16.msra.mxu0 0
    %313 = vmatprep.subr.bf16.mxu0 0
    %314 = vmatpush1.bf16.msra.mxu0 0
    %315 = vmatprep.subr.bf16.mxu0 0
    %316 = vmatpush1.bf16.msra.mxu0 0
    %317 = vmatprep.subr.bf16.mxu0 0
    %318 = vmatpush1.bf16.msra.mxu0 0
    %319 = vmatprep.subr.bf16.mxu0 0
    %320 = vmatpush1.bf16.msra.mxu0 0
    %321 = vmatprep.subr.bf16.mxu0 0
    %322 = vmatpush1.bf16.msra.mxu0 0
    %323 = vmatprep.subr.bf16.mxu0 0
    %324 = vmatpush1.bf16.msra.mxu0 0
    %325 = vmatprep.subr.bf16.mxu0 0
    %326 = vmatpush1.bf16.msra.mxu0 0
    %327 = vmatprep.subr.bf16.mxu0 0
    %328 = vmatpush1.bf16.msra.mxu0 0
    %329 = vmatprep.subr.bf16.mxu0 0
    %330 = vmatpush1.bf16.msra.mxu0 0
    %331 = vmatprep.mubr.bf16.mxu0 0
    %332 = vmatmul.mubr.bf16.gmra.mrb[0].mxu0 %v220
    %v333 = vpop.f32.mrb[0].mxu0
    %v334 = vadd.f32 0.0, %v333
    %v335 = vpop.f32.mrb[0].mxu0
    %v336 = vpop.f32.mrb[0].mxu0
    %v337 = vpop.f32.mrb[0].mxu0
    %338 = vdwg.mxu0
    %v339 = vmul.f32 %v272, %v159
    %v340 = vmul.f32 %v272, %v160
    %v341 = vmul.f32 %v272, %v161
    %v342 = vmul.f32 %v272, %v162
    %v343 = vpack.c.bf16 %v340, %v339
    %v344 = vpack.c.bf16 %v342, %v341
    %v345 = vpack.c.bf16 %v286, %v286
    %347 = vrot.lane.b32.xlu0 %v345, 64
    %v348 = vpop.permute.xlu0 %347
    %v350 = vsel %vm190, %v343, 0
    %v353 = vsel %vm190, %v344, 0
    %v356 = vsel %vm190, %v348, 0
    %358 = vmatprep.subr.bf16.mxu0 0
    %359 = vmatpush1.bf16.xpose.msra.mxu0 %v356
    %360 = vmatprep.subr.bf16.mxu0 0
    %361 = vmatpush1.bf16.xpose.msra.mxu0 0
    %362 = vmatprep.subr.bf16.mxu0 0
    %363 = vmatpush1.bf16.xpose.msra.mxu0 0
    %364 = vmatprep.subr.bf16.mxu0 0
    %365 = vmatpush1.bf16.xpose.msra.mxu0 0
    %366 = vmatprep.subr.bf16.mxu0 0
    %367 = vmatpush1.bf16.xpose.msra.mxu0 0
    %368 = vmatprep.subr.bf16.mxu0 0
    %369 = vmatpush1.bf16.xpose.msra.mxu0 0
    %370 = vmatprep.subr.bf16.mxu0 0
    %371 = vmatpush1.bf16.xpose.msra.mxu0 0
    %372 = vmatprep.subr.bf16.mxu0 0
    %373 = vmatpush1.bf16.xpose.msra.mxu0 0
    %374 = vmatprep.subr.bf16.mxu0 0
    %375 = vmatpush1.bf16.xpose.msra.mxu0 0
    %376 = vmatprep.subr.bf16.mxu0 0
    %377 = vmatpush1.bf16.xpose.msra.mxu0 0
    %378 = vmatprep.subr.bf16.mxu0 0
    %379 = vmatpush1.bf16.xpose.msra.mxu0 0
    %380 = vmatprep.subr.bf16.mxu0 0
    %381 = vmatpush1.bf16.xpose.msra.mxu0 0
    %382 = vmatprep.subr.bf16.mxu0 0
    %383 = vmatpush1.bf16.xpose.msra.mxu0 0
    %384 = vmatprep.subr.bf16.mxu0 0
    %385 = vmatpush1.bf16.xpose.msra.mxu0 0
    %386 = vmatprep.subr.bf16.mxu0 0
    %387 = vmatpush1.bf16.xpose.msra.mxu0 0
    %388 = vmatprep.subr.bf16.mxu0 0
    %389 = vmatpush1.bf16.xpose.msra.mxu0 0
    %390 = vmatprep.mubr.bf16.mxu0 0
    %391 = vmatmul.mubr.bf16.gmra.mrb[0].mxu0 %v350
    %v392 = vpop.f32.mrb[0].mxu0
    %v393 = vadd.f32 %v163, %v392
    %v394 = vpop.f32.mrb[0].mxu0
    %v395 = vpop.f32.mrb[0].mxu0
    %v396 = vadd.f32 %v164, %v395
    %v397 = vpop.f32.mrb[0].mxu0
    %398 = vmatprep.mubr.bf16.mxu0 0
    %399 = vmatmul.mubr.bf16.gmra.mrb[0].mxu0 %v353
    %v400 = vpop.f32.mrb[0].mxu0
    %v401 = vadd.f32 %v165, %v400
    %v402 = vpop.f32.mrb[0].mxu0
    %v403 = vpop.f32.mrb[0].mxu0
    %v404 = vadd.f32 %v166, %v403
    %v405 = vpop.f32.mrb[0].mxu0
    %406 = vdwg.mxu0
    %vm407 = vcmask 64512
    %v408 = vsel %vm407, %v393, -inf
    %409 = vmax.xlane.f32.xlu0 %v408
    %v410 = vpop.xlane.xlu0 %409
    %v411 = vsel %vm407, %v396, -inf
    %412 = vmax.xlane.f32.xlu0 %v411
    %v413 = vpop.xlane.xlu0 %412
    %v414 = vsel %vm407, %v401, -inf
    %415 = vmax.xlane.f32.xlu0 %v414
    %v416 = vpop.xlane.xlu0 %415
    %v417 = vsel %vm407, %v404, -inf
    %418 = vmax.xlane.f32.xlu0 %v417
    %v419 = vpop.xlane.xlu0 %418
    %v420 = vsub.f32 %v393, %v410
    %v421 = vsub.f32 %v396, %v413
    %v422 = vsub.f32 %v401, %v416
    %v423 = vsub.f32 %v404, %v419
    %v424 = vmul.f32 %v420, 1.442695
    %v425 = vpow.pop %v424
    %v426 = vmul.f32 %v421, 1.442695
    %v427 = vpow.pop %v426
    %v428 = vmul.f32 %v422, 1.442695
    %v429 = vpow.pop %v428
    %v430 = vmul.f32 %v423, 1.442695
    %v431 = vpow.pop %v430
    %v432 = vsel %vm407, %v425, 0.0
    %433 = vadd.xlane.f32.xlu0 %v432
    %v434 = vpop.xlane.xlu0 %433
    %v435 = vsel %vm407, %v427, 0.0
    %436 = vadd.xlane.f32.xlu0 %v435
    %v437 = vpop.xlane.xlu0 %436
    %v438 = vsel %vm407, %v429, 0.0
    %439 = vadd.xlane.f32.xlu0 %v438
    %v440 = vpop.xlane.xlu0 %439
    %v441 = vsel %vm407, %v431, 0.0
    %442 = vadd.xlane.f32.xlu0 %v441
    %v443 = vpop.xlane.xlu0 %442
    %v444 = vrcp.pop %v434
    %v445 = vrcp.pop %v437
    %v446 = vrcp.pop %v440
    %v447 = vrcp.pop %v443
    %v448 = vmul.f32 %v425, %v444
    %v449 = vmul.f32 %v427, %v445
    %v450 = vmul.f32 %v429, %v446
    %v451 = vmul.f32 %v431, %v447
    %453 = vrot.lane.b32.xlu0 %v334, 96
    %v454 = vpop.permute.xlu0 %453
    %v457 = vsel %vm407, %v449, 0
    %459 = vmatprep.subr.mxu0 0.0
    %460 = vmatpush1.msra.mxu0 %v454
    %461 = vmatprep.subr.mxu0 0.0
    %462 = vmatpush1.msra.mxu0 0.0
    %463 = vmatprep.subr.mxu0 0.0
    %464 = vmatpush1.msra.mxu0 0.0
    %465 = vmatprep.subr.mxu0 0.0
    %466 = vmatpush1.msra.mxu0 0.0
    %467 = vmatprep.subr.mxu0 0.0
    %468 = vmatpush1.msra.mxu0 0.0
    %469 = vmatprep.subr.mxu0 0.0
    %470 = vmatpush1.msra.mxu0 0.0
    %471 = vmatprep.subr.mxu0 0.0
    %472 = vmatpush1.msra.mxu0 0.0
    %473 = vmatprep.subr.mxu0 0.0
    %474 = vmatpush1.msra.mxu0 0.0
    %475 = vmatprep.subr.mxu0 0.0
    %476 = vmatpush1.msra.mxu0 0.0
    %477 = vmatprep.subr.mxu0 0.0
    %478 = vmatpush1.msra.mxu0 0.0
    %479 = vmatprep.subr.mxu0 0.0
    %480 = vmatpush1.msra.mxu0 0.0
    %481 = vmatprep.subr.mxu0 0.0
    %482 = vmatpush1.msra.mxu0 0.0
    %483 = vmatprep.subr.mxu0 0.0
    %484 = vmatpush1.msra.mxu0 0.0
    %485 = vmatprep.subr.mxu0 0.0
    %486 = vmatpush1.msra.mxu0 0.0
    %487 = vmatprep.subr.mxu0 0.0
    %488 = vmatpush1.msra.mxu0 0.0
    %489 = vmatprep.subr.mxu0 0.0
    %490 = vmatpush1.msra.mxu0 0.0
    %491 = vmatprep.subr.mxu0 0.0
    %492 = vmatpush1.msra.mxu0 0.0
    %493 = vmatprep.subr.mxu0 0.0
    %494 = vmatpush1.msra.mxu0 0.0
    %495 = vmatprep.subr.mxu0 0.0
    %496 = vmatpush1.msra.mxu0 0.0
    %497 = vmatprep.subr.mxu0 0.0
    %498 = vmatpush1.msra.mxu0 0.0
    %499 = vmatprep.subr.mxu0 0.0
    %500 = vmatpush1.msra.mxu0 0.0
    %501 = vmatprep.subr.mxu0 0.0
    %502 = vmatpush1.msra.mxu0 0.0
    %503 = vmatprep.subr.mxu0 0.0
    %504 = vmatpush1.msra.mxu0 0.0
    %505 = vmatprep.subr.mxu0 0.0
    %506 = vmatpush1.msra.mxu0 0.0
    %507 = vmatprep.subr.mxu0 0.0
    %508 = vmatpush1.msra.mxu0 0.0
    %509 = vmatprep.subr.mxu0 0.0
    %510 = vmatpush1.msra.mxu0 0.0
    %511 = vmatprep.subr.mxu0 0.0
    %512 = vmatpush1.msra.mxu0 0.0
    %513 = vmatprep.subr.mxu0 0.0
    %514 = vmatpush1.msra.mxu0 0.0
    %515 = vmatprep.subr.mxu0 0.0
    %516 = vmatpush1.msra.mxu0 0.0
    %517 = vmatprep.subr.mxu0 0.0
    %518 = vmatpush1.msra.mxu0 0.0
    %519 = vmatprep.subr.mxu0 0.0
    %520 = vmatpush1.msra.mxu0 0.0
    %521 = vmatprep.subr.mxu0 0.0
    %522 = vmatpush1.msra.mxu0 0.0
    %523 = vmatprep.mubr.f32.mxu0 0.0
    %524 = vmatmul.mubr.f32.gmra.mrb[0].mxu0 %v457
    %v525 = vpop.f32.mrb[0].mxu0
    %v526 = vadd.f32 0.0, %v525
    %v527 = vpop.f32.mrb[0].mxu0
    %528 = vdwg.mxu0
    %v530 = vsel %vm407, %v448, 0
    %532 = vmatprep.subr.mxu0 0.0
    %533 = vmatpush1.msra.mxu0 %v334
    %534 = vmatprep.subr.mxu0 0.0
    %535 = vmatpush1.msra.mxu0 0.0
    %536 = vmatprep.subr.mxu0 0.0
    %537 = vmatpush1.msra.mxu0 0.0
    %538 = vmatprep.subr.mxu0 0.0
    %539 = vmatpush1.msra.mxu0 0.0
    %540 = vmatprep.subr.mxu0 0.0
    %541 = vmatpush1.msra.mxu0 0.0
    %542 = vmatprep.subr.mxu0 0.0
    %543 = vmatpush1.msra.mxu0 0.0
    %544 = vmatprep.subr.mxu0 0.0
    %545 = vmatpush1.msra.mxu0 0.0
    %546 = vmatprep.subr.mxu0 0.0
    %547 = vmatpush1.msra.mxu0 0.0
    %548 = vmatprep.subr.mxu0 0.0
    %549 = vmatpush1.msra.mxu0 0.0
    %550 = vmatprep.subr.mxu0 0.0
    %551 = vmatpush1.msra.mxu0 0.0
    %552 = vmatprep.subr.mxu0 0.0
    %553 = vmatpush1.msra.mxu0 0.0
    %554 = vmatprep.subr.mxu0 0.0
    %555 = vmatpush1.msra.mxu0 0.0
    %556 = vmatprep.subr.mxu0 0.0
    %557 = vmatpush1.msra.mxu0 0.0
    %558 = vmatprep.subr.mxu0 0.0
    %559 = vmatpush1.msra.mxu0 0.0
    %560 = vmatprep.subr.mxu0 0.0
    %561 = vmatpush1.msra.mxu0 0.0
    %562 = vmatprep.subr.mxu0 0.0
    %563 = vmatpush1.msra.mxu0 0.0
    %564 = vmatprep.subr.mxu0 0.0
    %565 = vmatpush1.msra.mxu0 0.0
    %566 = vmatprep.subr.mxu0 0.0
    %567 = vmatpush1.msra.mxu0 0.0
    %568 = vmatprep.subr.mxu0 0.0
    %569 = vmatpush1.msra.mxu0 0.0
    %570 = vmatprep.subr.mxu0 0.0
    %571 = vmatpush1.msra.mxu0 0.0
    %572 = vmatprep.subr.mxu0 0.0
    %573 = vmatpush1.msra.mxu0 0.0
    %574 = vmatprep.subr.mxu0 0.0
    %575 = vmatpush1.msra.mxu0 0.0
    %576 = vmatprep.subr.mxu0 0.0
    %577 = vmatpush1.msra.mxu0 0.0
    %578 = vmatprep.subr.mxu0 0.0
    %579 = vmatpush1.msra.mxu0 0.0
    %580 = vmatprep.subr.mxu0 0.0
    %581 = vmatpush1.msra.mxu0 0.0
    %582 = vmatprep.subr.mxu0 0.0
    %583 = vmatpush1.msra.mxu0 0.0
    %584 = vmatprep.subr.mxu0 0.0
    %585 = vmatpush1.msra.mxu0 0.0
    %586 = vmatprep.subr.mxu0 0.0
    %587 = vmatpush1.msra.mxu0 0.0
    %588 = vmatprep.subr.mxu0 0.0
    %589 = vmatpush1.msra.mxu0 0.0
    %590 = vmatprep.subr.mxu0 0.0
    %591 = vmatpush1.msra.mxu0 0.0
    %592 = vmatprep.subr.mxu0 0.0
    %593 = vmatpush1.msra.mxu0 0.0
    %594 = vmatprep.subr.mxu0 0.0
    %595 = vmatpush1.msra.mxu0 0.0
    %596 = vmatprep.mubr.f32.mxu0 0.0
    %597 = vmatmul.mubr.f32.gmra.mrb[0].mxu0 %v530
    %v598 = vpop.f32.mrb[0].mxu0
    %v599 = vadd.f32 %v526, %v598
    %v600 = vpop.f32.mrb[0].mxu0
    %601 = vdwg.mxu0
    %602 = vrot.lane.b32.xlu0 %v334, 64
    %v603 = vpop.permute.xlu0 %602
    %v606 = vsel %vm407, %v450, 0
    %608 = vmatprep.subr.mxu0 0.0
    %609 = vmatpush1.msra.mxu0 %v603
    %610 = vmatprep.subr.mxu0 0.0
    %611 = vmatpush1.msra.mxu0 0.0
    %612 = vmatprep.subr.mxu0 0.0
    %613 = vmatpush1.msra.mxu0 0.0
    %614 = vmatprep.subr.mxu0 0.0
    %615 = vmatpush1.msra.mxu0 0.0
    %616 = vmatprep.subr.mxu0 0.0
    %617 = vmatpush1.msra.mxu0 0.0
    %618 = vmatprep.subr.mxu0 0.0
    %619 = vmatpush1.msra.mxu0 0.0
    %620 = vmatprep.subr.mxu0 0.0
    %621 = vmatpush1.msra.mxu0 0.0
    %622 = vmatprep.subr.mxu0 0.0
    %623 = vmatpush1.msra.mxu0 0.0
    %624 = vmatprep.subr.mxu0 0.0
    %625 = vmatpush1.msra.mxu0 0.0
    %626 = vmatprep.subr.mxu0 0.0
    %627 = vmatpush1.msra.mxu0 0.0
    %628 = vmatprep.subr.mxu0 0.0
    %629 = vmatpush1.msra.mxu0 0.0
    %630 = vmatprep.subr.mxu0 0.0
    %631 = vmatpush1.msra.mxu0 0.0
    %632 = vmatprep.subr.mxu0 0.0
    %633 = vmatpush1.msra.mxu0 0.0
    %634 = vmatprep.subr.mxu0 0.0
    %635 = vmatpush1.msra.mxu0 0.0
    %636 = vmatprep.subr.mxu0 0.0
    %637 = vmatpush1.msra.mxu0 0.0
    %638 = vmatprep.subr.mxu0 0.0
    %639 = vmatpush1.msra.mxu0 0.0
    %640 = vmatprep.subr.mxu0 0.0
    %641 = vmatpush1.msra.mxu0 0.0
    %642 = vmatprep.subr.mxu0 0.0
    %643 = vmatpush1.msra.mxu0 0.0
    %644 = vmatprep.subr.mxu0 0.0
    %645 = vmatpush1.msra.mxu0 0.0
    %646 = vmatprep.subr.mxu0 0.0
    %647 = vmatpush1.msra.mxu0 0.0
    %648 = vmatprep.subr.mxu0 0.0
    %649 = vmatpush1.msra.mxu0 0.0
    %650 = vmatprep.subr.mxu0 0.0
    %651 = vmatpush1.msra.mxu0 0.0
    %652 = vmatprep.subr.mxu0 0.0
    %653 = vmatpush1.msra.mxu0 0.0
    %654 = vmatprep.subr.mxu0 0.0
    %655 = vmatpush1.msra.mxu0 0.0
    %656 = vmatprep.subr.mxu0 0.0
    %657 = vmatpush1.msra.mxu0 0.0
    %658 = vmatprep.subr.mxu0 0.0
    %659 = vmatpush1.msra.mxu0 0.0
    %660 = vmatprep.subr.mxu0 0.0
    %661 = vmatpush1.msra.mxu0 0.0
    %662 = vmatprep.subr.mxu0 0.0
    %663 = vmatpush1.msra.mxu0 0.0
    %664 = vmatprep.subr.mxu0 0.0
    %665 = vmatpush1.msra.mxu0 0.0
    %666 = vmatprep.subr.mxu0 0.0
    %667 = vmatpush1.msra.mxu0 0.0
    %668 = vmatprep.subr.mxu0 0.0
    %669 = vmatpush1.msra.mxu0 0.0
    %670 = vmatprep.subr.mxu0 0.0
    %671 = vmatpush1.msra.mxu0 0.0
    %672 = vmatprep.mubr.f32.mxu0 0.0
    %673 = vmatmul.mubr.f32.gmra.mrb[0].mxu0 %v606
    %v674 = vpop.f32.mrb[0].mxu0
    %v675 = vadd.f32 0.0, %v674
    %v676 = vpop.f32.mrb[0].mxu0
    %677 = vdwg.mxu0
    %v678 = vadd.f32 %v599, %v675
    %679 = vrot.lane.b32.xlu0 %v334, 32
    %v680 = vpop.permute.xlu0 %679
    %v683 = vsel %vm407, %v451, 0
    %685 = vmatprep.subr.mxu0 0.0
    %686 = vmatpush1.msra.mxu0 %v680
    %687 = vmatprep.subr.mxu0 0.0
    %688 = vmatpush1.msra.mxu0 0.0
    %689 = vmatprep.subr.mxu0 0.0
    %690 = vmatpush1.msra.mxu0 0.0
    %691 = vmatprep.subr.mxu0 0.0
    %692 = vmatpush1.msra.mxu0 0.0
    %693 = vmatprep.subr.mxu0 0.0
    %694 = vmatpush1.msra.mxu0 0.0
    %695 = vmatprep.subr.mxu0 0.0
    %696 = vmatpush1.msra.mxu0 0.0
    %697 = vmatprep.subr.mxu0 0.0
    %698 = vmatpush1.msra.mxu0 0.0
    %699 = vmatprep.subr.mxu0 0.0
    %700 = vmatpush1.msra.mxu0 0.0
    %701 = vmatprep.subr.mxu0 0.0
    %702 = vmatpush1.msra.mxu0 0.0
    %703 = vmatprep.subr.mxu0 0.0
    %704 = vmatpush1.msra.mxu0 0.0
    %705 = vmatprep.subr.mxu0 0.0
    %706 = vmatpush1.msra.mxu0 0.0
    %707 = vmatprep.subr.mxu0 0.0
    %708 = vmatpush1.msra.mxu0 0.0
    %709 = vmatprep.subr.mxu0 0.0
    %710 = vmatpush1.msra.mxu0 0.0
    %711 = vmatprep.subr.mxu0 0.0
    %712 = vmatpush1.msra.mxu0 0.0
    %713 = vmatprep.subr.mxu0 0.0
    %714 = vmatpush1.msra.mxu0 0.0
    %715 = vmatprep.subr.mxu0 0.0
    %716 = vmatpush1.msra.mxu0 0.0
    %717 = vmatprep.subr.mxu0 0.0
    %718 = vmatpush1.msra.mxu0 0.0
    %719 = vmatprep.subr.mxu0 0.0
    %720 = vmatpush1.msra.mxu0 0.0
    %721 = vmatprep.subr.mxu0 0.0
    %722 = vmatpush1.msra.mxu0 0.0
    %723 = vmatprep.subr.mxu0 0.0
    %724 = vmatpush1.msra.mxu0 0.0
    %725 = vmatprep.subr.mxu0 0.0
    %726 = vmatpush1.msra.mxu0 0.0
    %727 = vmatprep.subr.mxu0 0.0
    %728 = vmatpush1.msra.mxu0 0.0
    %729 = vmatprep.subr.mxu0 0.0
    %730 = vmatpush1.msra.mxu0 0.0
    %731 = vmatprep.subr.mxu0 0.0
    %732 = vmatpush1.msra.mxu0 0.0
    %733 = vmatprep.subr.mxu0 0.0
    %734 = vmatpush1.msra.mxu0 0.0
    %735 = vmatprep.subr.mxu0 0.0
    %736 = vmatpush1.msra.mxu0 0.0
    %737 = vmatprep.subr.mxu0 0.0
    %738 = vmatpush1.msra.mxu0 0.0
    %739 = vmatprep.subr.mxu0 0.0
    %740 = vmatpush1.msra.mxu0 0.0
    %741 = vmatprep.subr.mxu0 0.0
    %742 = vmatpush1.msra.mxu0 0.0
    %743 = vmatprep.subr.mxu0 0.0
    %744 = vmatpush1.msra.mxu0 0.0
    %745 = vmatprep.subr.mxu0 0.0
    %746 = vmatpush1.msra.mxu0 0.0
    %747 = vmatprep.subr.mxu0 0.0
    %748 = vmatpush1.msra.mxu0 0.0
    %749 = vmatprep.mubr.f32.mxu0 0.0
    %750 = vmatmul.mubr.f32.gmra.mrb[0].mxu0 %v683
    %v751 = vpop.f32.mrb[0].mxu0
    %v752 = vadd.f32 0.0, %v751
    %v753 = vpop.f32.mrb[0].mxu0
    %754 = vdwg.mxu0
    %v755 = vadd.f32 %v678, %v752
    %v756 = vadd.f32 %v152, %v755
    %v757 = vmul.f32 %v756, %v756
    %v758 = vsel %vm190, %v757, 0.0
    %759 = vadd.xlane.f32.xlu0 %v758
    %v760 = vpop.xlane.xlu0 %759
    %v761 = vmul.f32 %v760, %v194
    %v762 = vadd.f32 %v761, 1e-06
    %v763 = vrsqrt.pop %v762
    %v764 = vmul.f32 %v756, %v763
    %v766 = vlaneseq
    %v767 = vshrl.u32 %v766, 7
    %v768 = vsub.s32 0, %v767
    %v769 = vrot.slane %v188, %v768
    %v771 = vmul.f32 %v764, %v769
    %v772 = vpack.c.bf16 %v771, %v771
    %v777 = vunpack.c.l.b16 %v175
    %v778 = vunpack.c.l.b16 %v176
    %v779 = vunpack.c.l.b16 %v177
    %v780 = vunpack.c.l.b16 %v178
    %v781 = vpack.c.b16 %v778, %v777
    %v782 = vpack.c.b16 %v780, %v779
    %v786 = vsel %vm190, %v772, 0
    %788 = vmatprep.subr.bf16.mxu0 0
    %789 = vmatpush1.bf16.msra.mxu0 %v781
    %790 = vmatprep.subr.bf16.mxu0 0
    %791 = vmatpush1.bf16.msra.mxu0 %v782
    %792 = vmatprep.subr.bf16.mxu0 0
    %793 = vmatpush1.bf16.msra.mxu0 0
    %794 = vmatprep.subr.bf16.mxu0 0
    %795 = vmatpush1.bf16.msra.mxu0 0
    %796 = vmatprep.subr.bf16.mxu0 0
    %797 = vmatpush1.bf16.msra.mxu0 0
    %798 = vmatprep.subr.bf16.mxu0 0
    %799 = vmatpush1.bf16.msra.mxu0 0
    %800 = vmatprep.subr.bf16.mxu0 0
    %801 = vmatpush1.bf16.msra.mxu0 0
    %802 = vmatprep.subr.bf16.mxu0 0
    %803 = vmatpush1.bf16.msra.mxu0 0
    %804 = vmatprep.subr.bf16.mxu0 0
    %805 = vmatpush1.bf16.msra.mxu0 0
    %806 = vmatprep.subr.bf16.mxu0 0
    %807 = vmatpush1.bf16.msra.mxu0 0
    %808 = vmatprep.subr.bf16.mxu0 0
    %809 = vmatpush1.bf16.msra.mxu0 0
    %810 = vmatprep.subr.bf16.mxu0 0
    %811 = vmatpush1.bf16.msra.mxu0 0
    %812 = vmatprep.subr.bf16.mxu0 0
    %813 = vmatpush1.bf16.msra.mxu0 0
    %814 = vmatprep.subr.bf16.mxu0 0
    %815 = vmatpush1.bf16.msra.mxu0 0
    %816 = vmatprep.subr.bf16.mxu0 0
    %817 = vmatpush1.bf16.msra.mxu0 0
    %818 = vmatprep.subr.bf16.mxu0 0
    %819 = vmatpush1.bf16.msra.mxu0 0
    %820 = vmatprep.mubr.bf16.mxu0 0
    %821 = vmatmul.mubr.bf16.gmra.mrb[0].mxu0 %v786
    %v822 = vpop.f32.mrb[0].mxu0
    %v823 = vadd.f32 0.0, %v822
    %v824 = vpop.f32.mrb[0].mxu0
    %v825 = vpop.f32.mrb[0].mxu0
    %v826 = vpop.f32.mrb[0].mxu0
    %827 = vdwg.mxu0
    %v828 = vxor.u32 %v823, 2147483648
    %v829 = vmul.f32 %v828, 1.442695
    %v830 = vpow.pop %v829
    %v831 = vadd.f32 %v830, 1.0
    %v832 = vrcp.pop %v831
    %v833 = vmul.f32 1.0, %v832
    %v834 = vmul.f32 %v823, %v833
    %836 = vrot.lane.b32.xlu0 %v823, 64
    %v837 = vpop.permute.xlu0 %836
    %v839 = vmul.f32 %v834, %v837
    %v840 = vpack.c.bf16 %v839, %v839
    %v849 = vunpack.c.l.b16 %v179
    %v850 = vunpack.c.l.b16 %v180
    %v851 = vunpack.c.l.b16 %v181
    %v852 = vunpack.c.l.b16 %v182
    %v853 = vunpack.c.l.b16 %v183
    %v854 = vunpack.c.l.b16 %v184
    %v855 = vunpack.c.l.b16 %v185
    %v856 = vunpack.c.l.b16 %v186
    %v857 = vpack.c.b16 %v850, %v849
    %v858 = vpack.c.b16 %v852, %v851
    %v859 = vpack.c.b16 %v854, %v853
    %v860 = vpack.c.b16 %v856, %v855
    %vm865 = vcmask 523264
    %v867 = vsel %vm865, %v840, 0
    %869 = vmatprep.subr.bf16.mxu0 0
    %870 = vmatpush1.bf16.msra.mxu0 %v857
    %871 = vmatprep.subr.bf16.mxu0 0
    %872 = vmatpush1.bf16.msra.mxu0 %v858
    %873 = vmatprep.subr.bf16.mxu0 0
    %874 = vmatpush1.bf16.msra.mxu0 %v859
    %875 = vmatprep.subr.bf16.mxu0 0
    %876 = vmatpush1.bf16.msra.mxu0 %v860
    %877 = vmatprep.subr.bf16.mxu0 0
    %878 = vmatpush1.bf16.msra.mxu0 0
    %879 = vmatprep.subr.bf16.mxu0 0
    %880 = vmatpush1.bf16.msra.mxu0 0
    %881 = vmatprep.subr.bf16.mxu0 0
    %882 = vmatpush1.bf16.msra.mxu0 0
    %883 = vmatprep.subr.bf16.mxu0 0
    %884 = vmatpush1.bf16.msra.mxu0 0
    %885 = vmatprep.subr.bf16.mxu0 0
    %886 = vmatpush1.bf16.msra.mxu0 0
    %887 = vmatprep.subr.bf16.mxu0 0
    %888 = vmatpush1.bf16.msra.mxu0 0
    %889 = vmatprep.subr.bf16.mxu0 0
    %890 = vmatpush1.bf16.msra.mxu0 0
    %891 = vmatprep.subr.bf16.mxu0 0
    %892 = vmatpush1.bf16.msra.mxu0 0
    %893 = vmatprep.subr.bf16.mxu0 0
    %894 = vmatpush1.bf16.msra.mxu0 0
    %895 = vmatprep.subr.bf16.mxu0 0
    %896 = vmatpush1.bf16.msra.mxu0 0
    %897 = vmatprep.subr.bf16.mxu0 0
    %898 = vmatpush1.bf16.msra.mxu0 0
    %899 = vmatprep.subr.bf16.mxu0 0
    %900 = vmatpush1.bf16.msra.mxu0 0
    %901 = vmatprep.mubr.bf16.mxu0 0
    %902 = vmatmul.mubr.bf16.gmra.mrb[0].mxu0 %v867
    %v903 = vpop.f32.mrb[0].mxu0
    %v904 = vadd.f32 0.0, %v903
    %v905 = vpop.f32.mrb[0].mxu0
    %v906 = vpop.f32.mrb[0].mxu0
    %v907 = vpop.f32.mrb[0].mxu0
    %908 = vdwg.mxu0
    %v909 = vadd.f32 %v756, %v904
    %s910 = scalar_lea.vmem %s6, 16
    %v911 = vld [vmem:[%s910] sm:$0xf]
    %v912 = vld [vmem:[%s910 + $0x4] sm:$0xf]
    %v913 = vld [vmem:[%s910 + $0x8] sm:$0xf]
    %v914 = vld [vmem:[%s910 + $0xc] sm:$0xf]
    %s915 = scalar_lea.vmem %s7, 16
    %v916 = vld [vmem:[%s915] sm:$0xf]
    %v917 = vld [vmem:[%s915 + $0x4] sm:$0xf]
    %v918 = vld [vmem:[%s915 + $0x8] sm:$0xf]
    %v919 = vld [vmem:[%s915 + $0xc] sm:$0xf]
    %s920 = scalar_lea.vmem %s8, 16
    %v921 = vld [vmem:[%s920] sm:$0xf]
    %v922 = vld [vmem:[%s920 + $0x4] sm:$0xf]
    %v923 = vld [vmem:[%s920 + $0x8] sm:$0xf]
    %v924 = vld [vmem:[%s920 + $0xc] sm:$0xf]
    %s925 = scalar_lea.vmem %s9, 32
    %v926 = vld [vmem:[%s925] sm:$0xf]
    %v927 = vld [vmem:[%s925 + $0x4] sm:$0xf]
    %v928 = vld [vmem:[%s925 + $0x8] sm:$0xf]
    %v929 = vld [vmem:[%s925 + $0xc] sm:$0xf]
    %v930 = vld [vmem:[%s925 + $0x10] sm:$0xf]
    %v931 = vld [vmem:[%s925 + $0x14] sm:$0xf]
    %v932 = vld [vmem:[%s925 + $0x18] sm:$0xf]
    %v933 = vld [vmem:[%s925 + $0x1c] sm:$0xf]
    %s934 = scalar_lea.vmem %s10, 1
    %v935 = vld [vmem:[%s934] sm:$0x1]
    %s936 = scalar_lea.vmem %s11, 1
    %v937 = vld [vmem:[%s936] sm:$0x1]
    %v938 = vmul.f32 %v909, %v909
    %v939 = vsel %vm190, %v938, 0.0
    %940 = vadd.xlane.f32.xlu0 %v939
    %v941 = vpop.xlane.xlu0 %940
    %v942 = vmul.f32 %v941, %v194
    %v943 = vadd.f32 %v942, 1e-06
    %v944 = vrsqrt.pop %v943
    %v945 = vmul.f32 %v909, %v944
    %v947 = vlaneseq
    %v948 = vshrl.u32 %v947, 7
    %v949 = vsub.s32 0, %v948
    %v950 = vrot.slane %v935, %v949
    %v952 = vmul.f32 %v945, %v950
    %v953 = vpack.c.bf16 %v952, %v952
    %v958 = vunpack.c.l.b16 %v911
    %v959 = vunpack.c.l.b16 %v912
    %v960 = vunpack.c.l.b16 %v913
    %v961 = vunpack.c.l.b16 %v914
    %v962 = vpack.c.b16 %v959, %v958
    %v963 = vpack.c.b16 %v961, %v960
    %v967 = vsel %vm190, %v953, 0
    %969 = vmatprep.subr.bf16.mxu0 0
    %970 = vmatpush1.bf16.msra.mxu0 %v962
    %971 = vmatprep.subr.bf16.mxu0 0
    %972 = vmatpush1.bf16.msra.mxu0 %v963
    %973 = vmatprep.subr.bf16.mxu0 0
    %974 = vmatpush1.bf16.msra.mxu0 0
    %975 = vmatprep.subr.bf16.mxu0 0
    %976 = vmatpush1.bf16.msra.mxu0 0
    %977 = vmatprep.subr.bf16.mxu0 0
    %978 = vmatpush1.bf16.msra.mxu0 0
    %979 = vmatprep.subr.bf16.mxu0 0
    %980 = vmatpush1.bf16.msra.mxu0 0
    %981 = vmatprep.subr.bf16.mxu0 0
    %982 = vmatpush1.bf16.msra.mxu0 0
    %983 = vmatprep.subr.bf16.mxu0 0
    %984 = vmatpush1.bf16.msra.mxu0 0
    %985 = vmatprep.subr.bf16.mxu0 0
    %986 = vmatpush1.bf16.msra.mxu0 0
    %987 = vmatprep.subr.bf16.mxu0 0
    %988 = vmatpush1.bf16.msra.mxu0 0
    %989 = vmatprep.subr.bf16.mxu0 0
    %990 = vmatpush1.bf16.msra.mxu0 0
    %991 = vmatprep.subr.bf16.mxu0 0
    %992 = vmatpush1.bf16.msra.mxu0 0
    %993 = vmatprep.subr.bf16.mxu0 0
    %994 = vmatpush1.bf16.msra.mxu0 0
    %995 = vmatprep.subr.bf16.mxu0 0
    %996 = vmatpush1.bf16.msra.mxu0 0
    %997 = vmatprep.subr.bf16.mxu0 0
    %998 = vmatpush1.bf16.msra.mxu0 0
    %999 = vmatprep.subr.bf16.mxu0 0
    %1000 = vmatpush1.bf16.msra.mxu0 0
    %1001 = vmatprep.mubr.bf16.mxu0 0
    %1002 = vmatmul.mubr.bf16.gmra.mrb[0].mxu0 %v967
    %v1003 = vpop.f32.mrb[0].mxu0
    %v1004 = vadd.f32 0.0, %v1003
    %v1005 = vpop.f32.mrb[0].mxu0
    %v1006 = vpop.f32.mrb[0].mxu0
    %v1007 = vpop.f32.mrb[0].mxu0
    %1008 = vdwg.mxu0
    %v1009 = vmul.f32 %v1004, %v157
    %v1010 = vmul.f32 %v1004, %v265
    %1012 = vrot.lane.b32.xlu0 %v1010, 96
    %v1013 = vpop.permute.xlu0 %1012
    %v1015 = vadd.f32 %v1009, %v1013
    %v1016 = vmul.f32 %v1004, %v275
    %v1017 = vmul.f32 %v1004, %v279
    %1019 = vrot.lane.b32.xlu0 %v1017, 96
    %v1020 = vpop.permute.xlu0 %1019
    %v1022 = vadd.f32 %v1016, %v1020
    %v1027 = vunpack.c.l.b16 %v916
    %v1028 = vunpack.c.l.b16 %v917
    %v1029 = vunpack.c.l.b16 %v918
    %v1030 = vunpack.c.l.b16 %v919
    %v1031 = vpack.c.b16 %v1028, %v1027
    %v1032 = vpack.c.b16 %v1030, %v1029
    %1035 = vmatprep.subr.bf16.mxu0 0
    %1036 = vmatpush1.bf16.msra.mxu0 %v1031
    %1037 = vmatprep.subr.bf16.mxu0 0
    %1038 = vmatpush1.bf16.msra.mxu0 %v1032
    %1039 = vmatprep.subr.bf16.mxu0 0
    %1040 = vmatpush1.bf16.msra.mxu0 0
    %1041 = vmatprep.subr.bf16.mxu0 0
    %1042 = vmatpush1.bf16.msra.mxu0 0
    %1043 = vmatprep.subr.bf16.mxu0 0
    %1044 = vmatpush1.bf16.msra.mxu0 0
    %1045 = vmatprep.subr.bf16.mxu0 0
    %1046 = vmatpush1.bf16.msra.mxu0 0
    %1047 = vmatprep.subr.bf16.mxu0 0
    %1048 = vmatpush1.bf16.msra.mxu0 0
    %1049 = vmatprep.subr.bf16.mxu0 0
    %1050 = vmatpush1.bf16.msra.mxu0 0
    %1051 = vmatprep.subr.bf16.mxu0 0
    %1052 = vmatpush1.bf16.msra.mxu0 0
    %1053 = vmatprep.subr.bf16.mxu0 0
    %1054 = vmatpush1.bf16.msra.mxu0 0
    %1055 = vmatprep.subr.bf16.mxu0 0
    %1056 = vmatpush1.bf16.msra.mxu0 0
    %1057 = vmatprep.subr.bf16.mxu0 0
    %1058 = vmatpush1.bf16.msra.mxu0 0
    %1059 = vmatprep.subr.bf16.mxu0 0
    %1060 = vmatpush1.bf16.msra.mxu0 0
    %1061 = vmatprep.subr.bf16.mxu0 0
    %1062 = vmatpush1.bf16.msra.mxu0 0
    %1063 = vmatprep.subr.bf16.mxu0 0
    %1064 = vmatpush1.bf16.msra.mxu0 0
    %1065 = vmatprep.subr.bf16.mxu0 0
    %1066 = vmatpush1.bf16.msra.mxu0 0
    %1067 = vmatprep.mubr.bf16.mxu0 0
    %1068 = vmatmul.mubr.bf16.gmra.mrb[0].mxu0 %v967
    %v1069 = vpop.f32.mrb[0].mxu0
    %v1070 = vadd.f32 0.0, %v1069
    %v1071 = vpop.f32.mrb[0].mxu0
    %v1072 = vpop.f32.mrb[0].mxu0
    %v1073 = vpop.f32.mrb[0].mxu0
    %1074 = vdwg.mxu0
    %v1075 = vmul.f32 %v1015, %v159
    %v1076 = vmul.f32 %v1015, %v160
    %v1077 = vmul.f32 %v1015, %v161
    %v1078 = vmul.f32 %v1015, %v162
    %v1079 = vpack.c.bf16 %v1076, %v1075
    %v1080 = vpack.c.bf16 %v1078, %v1077
    %v1081 = vpack.c.bf16 %v1022, %v1022
    %1083 = vrot.lane.b32.xlu0 %v1081, 64
    %v1084 = vpop.permute.xlu0 %1083
    %v1086 = vsel %vm190, %v1079, 0
    %v1089 = vsel %vm190, %v1080, 0
    %v1092 = vsel %vm190, %v1084, 0
    %1094 = vmatprep.subr.bf16.mxu0 0
    %1095 = vmatpush1.bf16.xpose.msra.mxu0 %v1092
    %1096 = vmatprep.subr.bf16.mxu0 0
    %1097 = vmatpush1.bf16.xpose.msra.mxu0 0
    %1098 = vmatprep.subr.bf16.mxu0 0
    %1099 = vmatpush1.bf16.xpose.msra.mxu0 0
    %1100 = vmatprep.subr.bf16.mxu0 0
    %1101 = vmatpush1.bf16.xpose.msra.mxu0 0
    %1102 = vmatprep.subr.bf16.mxu0 0
    %1103 = vmatpush1.bf16.xpose.msra.mxu0 0
    %1104 = vmatprep.subr.bf16.mxu0 0
    %1105 = vmatpush1.bf16.xpose.msra.mxu0 0
    %1106 = vmatprep.subr.bf16.mxu0 0
    %1107 = vmatpush1.bf16.xpose.msra.mxu0 0
    %1108 = vmatprep.subr.bf16.mxu0 0
    %1109 = vmatpush1.bf16.xpose.msra.mxu0 0
    %1110 = vmatprep.subr.bf16.mxu0 0
    %1111 = vmatpush1.bf16.xpose.msra.mxu0 0
    %1112 = vmatprep.subr.bf16.mxu0 0
    %1113 = vmatpush1.bf16.xpose.msra.mxu0 0
    %1114 = vmatprep.subr.bf16.mxu0 0
    %1115 = vmatpush1.bf16.xpose.msra.mxu0 0
    %1116 = vmatprep.subr.bf16.mxu0 0
    %1117 = vmatpush1.bf16.xpose.msra.mxu0 0
    %1118 = vmatprep.subr.bf16.mxu0 0
    %1119 = vmatpush1.bf16.xpose.msra.mxu0 0
    %1120 = vmatprep.subr.bf16.mxu0 0
    %1121 = vmatpush1.bf16.xpose.msra.mxu0 0
    %1122 = vmatprep.subr.bf16.mxu0 0
    %1123 = vmatpush1.bf16.xpose.msra.mxu0 0
    %1124 = vmatprep.subr.bf16.mxu0 0
    %1125 = vmatpush1.bf16.xpose.msra.mxu0 0
    %1126 = vmatprep.mubr.bf16.mxu0 0
    %1127 = vmatmul.mubr.bf16.gmra.mrb[0].mxu0 %v1086
    %v1128 = vpop.f32.mrb[0].mxu0
    %v1129 = vadd.f32 %v163, %v1128
    %v1130 = vpop.f32.mrb[0].mxu0
    %v1131 = vpop.f32.mrb[0].mxu0
    %v1132 = vadd.f32 %v164, %v1131
    %v1133 = vpop.f32.mrb[0].mxu0
    %1134 = vmatprep.mubr.bf16.mxu0 0
    %1135 = vmatmul.mubr.bf16.gmra.mrb[0].mxu0 %v1089
    %v1136 = vpop.f32.mrb[0].mxu0
    %v1137 = vadd.f32 %v165, %v1136
    %v1138 = vpop.f32.mrb[0].mxu0
    %v1139 = vpop.f32.mrb[0].mxu0
    %v1140 = vadd.f32 %v166, %v1139
    %v1141 = vpop.f32.mrb[0].mxu0
    %1142 = vdwg.mxu0
    %v1143 = vsel %vm407, %v1129, -inf
    %1144 = vmax.xlane.f32.xlu0 %v1143
    %v1145 = vpop.xlane.xlu0 %1144
    %v1146 = vsel %vm407, %v1132, -inf
    %1147 = vmax.xlane.f32.xlu0 %v1146
    %v1148 = vpop.xlane.xlu0 %1147
    %v1149 = vsel %vm407, %v1137, -inf
    %1150 = vmax.xlane.f32.xlu0 %v1149
    %v1151 = vpop.xlane.xlu0 %1150
    %v1152 = vsel %vm407, %v1140, -inf
    %1153 = vmax.xlane.f32.xlu0 %v1152
    %v1154 = vpop.xlane.xlu0 %1153
    %v1155 = vsub.f32 %v1129, %v1145
    %v1156 = vsub.f32 %v1132, %v1148
    %v1157 = vsub.f32 %v1137, %v1151
    %v1158 = vsub.f32 %v1140, %v1154
    %v1159 = vmul.f32 %v1155, 1.442695
    %v1160 = vpow.pop %v1159
    %v1161 = vmul.f32 %v1156, 1.442695
    %v1162 = vpow.pop %v1161
    %v1163 = vmul.f32 %v1157, 1.442695
    %v1164 = vpow.pop %v1163
    %v1165 = vmul.f32 %v1158, 1.442695
    %v1166 = vpow.pop %v1165
    %v1167 = vsel %vm407, %v1160, 0.0
    %1168 = vadd.xlane.f32.xlu0 %v1167
    %v1169 = vpop.xlane.xlu0 %1168
    %v1170 = vsel %vm407, %v1162, 0.0
    %1171 = vadd.xlane.f32.xlu0 %v1170
    %v1172 = vpop.xlane.xlu0 %1171
    %v1173 = vsel %vm407, %v1164, 0.0
    %1174 = vadd.xlane.f32.xlu0 %v1173
    %v1175 = vpop.xlane.xlu0 %1174
    %v1176 = vsel %vm407, %v1166, 0.0
    %1177 = vadd.xlane.f32.xlu0 %v1176
    %v1178 = vpop.xlane.xlu0 %1177
    %v1179 = vrcp.pop %v1169
    %v1180 = vrcp.pop %v1172
    %v1181 = vrcp.pop %v1175
    %v1182 = vrcp.pop %v1178
    %v1183 = vmul.f32 %v1160, %v1179
    %v1184 = vmul.f32 %v1162, %v1180
    %v1185 = vmul.f32 %v1164, %v1181
    %v1186 = vmul.f32 %v1166, %v1182
    %1188 = vrot.lane.b32.xlu0 %v1070, 96
    %v1189 = vpop.permute.xlu0 %1188
    %v1192 = vsel %vm407, %v1184, 0
    %1194 = vmatprep.subr.mxu0 0.0
    %1195 = vmatpush1.msra.mxu0 %v1189
    %1196 = vmatprep.subr.mxu0 0.0
    %1197 = vmatpush1.msra.mxu0 0.0
    %1198 = vmatprep.subr.mxu0 0.0
    %1199 = vmatpush1.msra.mxu0 0.0
    %1200 = vmatprep.subr.mxu0 0.0
    %1201 = vmatpush1.msra.mxu0 0.0
    %1202 = vmatprep.subr.mxu0 0.0
    %1203 = vmatpush1.msra.mxu0 0.0
    %1204 = vmatprep.subr.mxu0 0.0
    %1205 = vmatpush1.msra.mxu0 0.0
    %1206 = vmatprep.subr.mxu0 0.0
    %1207 = vmatpush1.msra.mxu0 0.0
    %1208 = vmatprep.subr.mxu0 0.0
    %1209 = vmatpush1.msra.mxu0 0.0
    %1210 = vmatprep.subr.mxu0 0.0
    %1211 = vmatpush1.msra.mxu0 0.0
    %1212 = vmatprep.subr.mxu0 0.0
    %1213 = vmatpush1.msra.mxu0 0.0
    %1214 = vmatprep.subr.mxu0 0.0
    %1215 = vmatpush1.msra.mxu0 0.0
    %1216 = vmatprep.subr.mxu0 0.0
    %1217 = vmatpush1.msra.mxu0 0.0
    %1218 = vmatprep.subr.mxu0 0.0
    %1219 = vmatpush1.msra.mxu0 0.0
    %1220 = vmatprep.subr.mxu0 0.0
    %1221 = vmatpush1.msra.mxu0 0.0
    %1222 = vmatprep.subr.mxu0 0.0
    %1223 = vmatpush1.msra.mxu0 0.0
    %1224 = vmatprep.subr.mxu0 0.0
    %1225 = vmatpush1.msra.mxu0 0.0
    %1226 = vmatprep.subr.mxu0 0.0
    %1227 = vmatpush1.msra.mxu0 0.0
    %1228 = vmatprep.subr.mxu0 0.0
    %1229 = vmatpush1.msra.mxu0 0.0
    %1230 = vmatprep.subr.mxu0 0.0
    %1231 = vmatpush1.msra.mxu0 0.0
    %1232 = vmatprep.subr.mxu0 0.0
    %1233 = vmatpush1.msra.mxu0 0.0
    %1234 = vmatprep.subr.mxu0 0.0
    %1235 = vmatpush1.msra.mxu0 0.0
    %1236 = vmatprep.subr.mxu0 0.0
    %1237 = vmatpush1.msra.mxu0 0.0
    %1238 = vmatprep.subr.mxu0 0.0
    %1239 = vmatpush1.msra.mxu0 0.0
    %1240 = vmatprep.subr.mxu0 0.0
    %1241 = vmatpush1.msra.mxu0 0.0
    %1242 = vmatprep.subr.mxu0 0.0
    %1243 = vmatpush1.msra.mxu0 0.0
    %1244 = vmatprep.subr.mxu0 0.0
    %1245 = vmatpush1.msra.mxu0 0.0
    %1246 = vmatprep.subr.mxu0 0.0
    %1247 = vmatpush1.msra.mxu0 0.0
    %1248 = vmatprep.subr.mxu0 0.0
    %1249 = vmatpush1.msra.mxu0 0.0
    %1250 = vmatprep.subr.mxu0 0.0
    %1251 = vmatpush1.msra.mxu0 0.0
    %1252 = vmatprep.subr.mxu0 0.0
    %1253 = vmatpush1.msra.mxu0 0.0
    %1254 = vmatprep.subr.mxu0 0.0
    %1255 = vmatpush1.msra.mxu0 0.0
    %1256 = vmatprep.subr.mxu0 0.0
    %1257 = vmatpush1.msra.mxu0 0.0
    %1258 = vmatprep.mubr.f32.mxu0 0.0
    %1259 = vmatmul.mubr.f32.gmra.mrb[0].mxu0 %v1192
    %v1260 = vpop.f32.mrb[0].mxu0
    %v1261 = vadd.f32 0.0, %v1260
    %v1262 = vpop.f32.mrb[0].mxu0
    %1263 = vdwg.mxu0
    %v1265 = vsel %vm407, %v1183, 0
    %1267 = vmatprep.subr.mxu0 0.0
    %1268 = vmatpush1.msra.mxu0 %v1070
    %1269 = vmatprep.subr.mxu0 0.0
    %1270 = vmatpush1.msra.mxu0 0.0
    %1271 = vmatprep.subr.mxu0 0.0
    %1272 = vmatpush1.msra.mxu0 0.0
    %1273 = vmatprep.subr.mxu0 0.0
    %1274 = vmatpush1.msra.mxu0 0.0
    %1275 = vmatprep.subr.mxu0 0.0
    %1276 = vmatpush1.msra.mxu0 0.0
    %1277 = vmatprep.subr.mxu0 0.0
    %1278 = vmatpush1.msra.mxu0 0.0
    %1279 = vmatprep.subr.mxu0 0.0
    %1280 = vmatpush1.msra.mxu0 0.0
    %1281 = vmatprep.subr.mxu0 0.0
    %1282 = vmatpush1.msra.mxu0 0.0
    %1283 = vmatprep.subr.mxu0 0.0
    %1284 = vmatpush1.msra.mxu0 0.0
    %1285 = vmatprep.subr.mxu0 0.0
    %1286 = vmatpush1.msra.mxu0 0.0
    %1287 = vmatprep.subr.mxu0 0.0
    %1288 = vmatpush1.msra.mxu0 0.0
    %1289 = vmatprep.subr.mxu0 0.0
    %1290 = vmatpush1.msra.mxu0 0.0
    %1291 = vmatprep.subr.mxu0 0.0
    %1292 = vmatpush1.msra.mxu0 0.0
    %1293 = vmatprep.subr.mxu0 0.0
    %1294 = vmatpush1.msra.mxu0 0.0
    %1295 = vmatprep.subr.mxu0 0.0
    %1296 = vmatpush1.msra.mxu0 0.0
    %1297 = vmatprep.subr.mxu0 0.0
    %1298 = vmatpush1.msra.mxu0 0.0
    %1299 = vmatprep.subr.mxu0 0.0
    %1300 = vmatpush1.msra.mxu0 0.0
    %1301 = vmatprep.subr.mxu0 0.0
    %1302 = vmatpush1.msra.mxu0 0.0
    %1303 = vmatprep.subr.mxu0 0.0
    %1304 = vmatpush1.msra.mxu0 0.0
    %1305 = vmatprep.subr.mxu0 0.0
    %1306 = vmatpush1.msra.mxu0 0.0
    %1307 = vmatprep.subr.mxu0 0.0
    %1308 = vmatpush1.msra.mxu0 0.0
    %1309 = vmatprep.subr.mxu0 0.0
    %1310 = vmatpush1.msra.mxu0 0.0
    %1311 = vmatprep.subr.mxu0 0.0
    %1312 = vmatpush1.msra.mxu0 0.0
    %1313 = vmatprep.subr.mxu0 0.0
    %1314 = vmatpush1.msra.mxu0 0.0
    %1315 = vmatprep.subr.mxu0 0.0
    %1316 = vmatpush1.msra.mxu0 0.0
    %1317 = vmatprep.subr.mxu0 0.0
    %1318 = vmatpush1.msra.mxu0 0.0
    %1319 = vmatprep.subr.mxu0 0.0
    %1320 = vmatpush1.msra.mxu0 0.0
    %1321 = vmatprep.subr.mxu0 0.0
    %1322 = vmatpush1.msra.mxu0 0.0
    %1323 = vmatprep.subr.mxu0 0.0
    %1324 = vmatpush1.msra.mxu0 0.0
    %1325 = vmatprep.subr.mxu0 0.0
    %1326 = vmatpush1.msra.mxu0 0.0
    %1327 = vmatprep.subr.mxu0 0.0
    %1328 = vmatpush1.msra.mxu0 0.0
    %1329 = vmatprep.subr.mxu0 0.0
    %1330 = vmatpush1.msra.mxu0 0.0
    %1331 = vmatprep.mubr.f32.mxu0 0.0
    %1332 = vmatmul.mubr.f32.gmra.mrb[0].mxu0 %v1265
    %v1333 = vpop.f32.mrb[0].mxu0
    %v1334 = vadd.f32 %v1261, %v1333
    %v1335 = vpop.f32.mrb[0].mxu0
    %1336 = vdwg.mxu0
    %1337 = vrot.lane.b32.xlu0 %v1070, 64
    %v1338 = vpop.permute.xlu0 %1337
    %v1341 = vsel %vm407, %v1185, 0
    %1343 = vmatprep.subr.mxu0 0.0
    %1344 = vmatpush1.msra.mxu0 %v1338
    %1345 = vmatprep.subr.mxu0 0.0
    %1346 = vmatpush1.msra.mxu0 0.0
    %1347 = vmatprep.subr.mxu0 0.0
    %1348 = vmatpush1.msra.mxu0 0.0
    %1349 = vmatprep.subr.mxu0 0.0
    %1350 = vmatpush1.msra.mxu0 0.0
    %1351 = vmatprep.subr.mxu0 0.0
    %1352 = vmatpush1.msra.mxu0 0.0
    %1353 = vmatprep.subr.mxu0 0.0
    %1354 = vmatpush1.msra.mxu0 0.0
    %1355 = vmatprep.subr.mxu0 0.0
    %1356 = vmatpush1.msra.mxu0 0.0
    %1357 = vmatprep.subr.mxu0 0.0
    %1358 = vmatpush1.msra.mxu0 0.0
    %1359 = vmatprep.subr.mxu0 0.0
    %1360 = vmatpush1.msra.mxu0 0.0
    %1361 = vmatprep.subr.mxu0 0.0
    %1362 = vmatpush1.msra.mxu0 0.0
    %1363 = vmatprep.subr.mxu0 0.0
    %1364 = vmatpush1.msra.mxu0 0.0
    %1365 = vmatprep.subr.mxu0 0.0
    %1366 = vmatpush1.msra.mxu0 0.0
    %1367 = vmatprep.subr.mxu0 0.0
    %1368 = vmatpush1.msra.mxu0 0.0
    %1369 = vmatprep.subr.mxu0 0.0
    %1370 = vmatpush1.msra.mxu0 0.0
    %1371 = vmatprep.subr.mxu0 0.0
    %1372 = vmatpush1.msra.mxu0 0.0
    %1373 = vmatprep.subr.mxu0 0.0
    %1374 = vmatpush1.msra.mxu0 0.0
    %1375 = vmatprep.subr.mxu0 0.0
    %1376 = vmatpush1.msra.mxu0 0.0
    %1377 = vmatprep.subr.mxu0 0.0
    %1378 = vmatpush1.msra.mxu0 0.0
    %1379 = vmatprep.subr.mxu0 0.0
    %1380 = vmatpush1.msra.mxu0 0.0
    %1381 = vmatprep.subr.mxu0 0.0
    %1382 = vmatpush1.msra.mxu0 0.0
    %1383 = vmatprep.subr.mxu0 0.0
    %1384 = vmatpush1.msra.mxu0 0.0
    %1385 = vmatprep.subr.mxu0 0.0
    %1386 = vmatpush1.msra.mxu0 0.0
    %1387 = vmatprep.subr.mxu0 0.0
    %1388 = vmatpush1.msra.mxu0 0.0
    %1389 = vmatprep.subr.mxu0 0.0
    %1390 = vmatpush1.msra.mxu0 0.0
    %1391 = vmatprep.subr.mxu0 0.0
    %1392 = vmatpush1.msra.mxu0 0.0
    %1393 = vmatprep.subr.mxu0 0.0
    %1394 = vmatpush1.msra.mxu0 0.0
    %1395 = vmatprep.subr.mxu0 0.0
    %1396 = vmatpush1.msra.mxu0 0.0
    %1397 = vmatprep.subr.mxu0 0.0
    %1398 = vmatpush1.msra.mxu0 0.0
    %1399 = vmatprep.subr.mxu0 0.0
    %1400 = vmatpush1.msra.mxu0 0.0
    %1401 = vmatprep.subr.mxu0 0.0
    %1402 = vmatpush1.msra.mxu0 0.0
    %1403 = vmatprep.subr.mxu0 0.0
    %1404 = vmatpush1.msra.mxu0 0.0
    %1405 = vmatprep.subr.mxu0 0.0
    %1406 = vmatpush1.msra.mxu0 0.0
    %1407 = vmatprep.mubr.f32.mxu0 0.0
    %1408 = vmatmul.mubr.f32.gmra.mrb[0].mxu0 %v1341
    %v1409 = vpop.f32.mrb[0].mxu0
    %v1410 = vadd.f32 0.0, %v1409
    %v1411 = vpop.f32.mrb[0].mxu0
    %1412 = vdwg.mxu0
    %v1413 = vadd.f32 %v1334, %v1410
    %1414 = vrot.lane.b32.xlu0 %v1070, 32
    %v1415 = vpop.permute.xlu0 %1414
    %v1418 = vsel %vm407, %v1186, 0
    %1420 = vmatprep.subr.mxu0 0.0
    %1421 = vmatpush1.msra.mxu0 %v1415
    %1422 = vmatprep.subr.mxu0 0.0
    %1423 = vmatpush1.msra.mxu0 0.0
    %1424 = vmatprep.subr.mxu0 0.0
    %1425 = vmatpush1.msra.mxu0 0.0
    %1426 = vmatprep.subr.mxu0 0.0
    %1427 = vmatpush1.msra.mxu0 0.0
    %1428 = vmatprep.subr.mxu0 0.0
    %1429 = vmatpush1.msra.mxu0 0.0
    %1430 = vmatprep.subr.mxu0 0.0
    %1431 = vmatpush1.msra.mxu0 0.0
    %1432 = vmatprep.subr.mxu0 0.0
    %1433 = vmatpush1.msra.mxu0 0.0
    %1434 = vmatprep.subr.mxu0 0.0
    %1435 = vmatpush1.msra.mxu0 0.0
    %1436 = vmatprep.subr.mxu0 0.0
    %1437 = vmatpush1.msra.mxu0 0.0
    %1438 = vmatprep.subr.mxu0 0.0
    %1439 = vmatpush1.msra.mxu0 0.0
    %1440 = vmatprep.subr.mxu0 0.0
    %1441 = vmatpush1.msra.mxu0 0.0
    %1442 = vmatprep.subr.mxu0 0.0
    %1443 = vmatpush1.msra.mxu0 0.0
    %1444 = vmatprep.subr.mxu0 0.0
    %1445 = vmatpush1.msra.mxu0 0.0
    %1446 = vmatprep.subr.mxu0 0.0
    %1447 = vmatpush1.msra.mxu0 0.0
    %1448 = vmatprep.subr.mxu0 0.0
    %1449 = vmatpush1.msra.mxu0 0.0
    %1450 = vmatprep.subr.mxu0 0.0
    %1451 = vmatpush1.msra.mxu0 0.0
    %1452 = vmatprep.subr.mxu0 0.0
    %1453 = vmatpush1.msra.mxu0 0.0
    %1454 = vmatprep.subr.mxu0 0.0
    %1455 = vmatpush1.msra.mxu0 0.0
    %1456 = vmatprep.subr.mxu0 0.0
    %1457 = vmatpush1.msra.mxu0 0.0
    %1458 = vmatprep.subr.mxu0 0.0
    %1459 = vmatpush1.msra.mxu0 0.0
    %1460 = vmatprep.subr.mxu0 0.0
    %1461 = vmatpush1.msra.mxu0 0.0
    %1462 = vmatprep.subr.mxu0 0.0
    %1463 = vmatpush1.msra.mxu0 0.0
    %1464 = vmatprep.subr.mxu0 0.0
    %1465 = vmatpush1.msra.mxu0 0.0
    %1466 = vmatprep.subr.mxu0 0.0
    %1467 = vmatpush1.msra.mxu0 0.0
    %1468 = vmatprep.subr.mxu0 0.0
    %1469 = vmatpush1.msra.mxu0 0.0
    %1470 = vmatprep.subr.mxu0 0.0
    %1471 = vmatpush1.msra.mxu0 0.0
    %1472 = vmatprep.subr.mxu0 0.0
    %1473 = vmatpush1.msra.mxu0 0.0
    %1474 = vmatprep.subr.mxu0 0.0
    %1475 = vmatpush1.msra.mxu0 0.0
    %1476 = vmatprep.subr.mxu0 0.0
    %1477 = vmatpush1.msra.mxu0 0.0
    %1478 = vmatprep.subr.mxu0 0.0
    %1479 = vmatpush1.msra.mxu0 0.0
    %1480 = vmatprep.subr.mxu0 0.0
    %1481 = vmatpush1.msra.mxu0 0.0
    %1482 = vmatprep.subr.mxu0 0.0
    %1483 = vmatpush1.msra.mxu0 0.0
    %1484 = vmatprep.mubr.f32.mxu0 0.0
    %1485 = vmatmul.mubr.f32.gmra.mrb[0].mxu0 %v1418
    %v1486 = vpop.f32.mrb[0].mxu0
    %v1487 = vadd.f32 0.0, %v1486
    %v1488 = vpop.f32.mrb[0].mxu0
    %1489 = vdwg.mxu0
    %v1490 = vadd.f32 %v1413, %v1487
    %v1491 = vadd.f32 %v909, %v1490
    %v1492 = vmul.f32 %v1491, %v1491
    %v1493 = vsel %vm190, %v1492, 0.0
    %1494 = vadd.xlane.f32.xlu0 %v1493
    %v1495 = vpop.xlane.xlu0 %1494
    %v1496 = vmul.f32 %v1495, %v194
    %v1497 = vadd.f32 %v1496, 1e-06
    %v1498 = vrsqrt.pop %v1497
    %v1499 = vmul.f32 %v1491, %v1498
    %v1501 = vlaneseq
    %v1502 = vshrl.u32 %v1501, 7
    %v1503 = vsub.s32 0, %v1502
    %v1504 = vrot.slane %v937, %v1503
    %v1506 = vmul.f32 %v1499, %v1504
    %v1507 = vpack.c.bf16 %v1506, %v1506
    %v1512 = vunpack.c.l.b16 %v921
    %v1513 = vunpack.c.l.b16 %v922
    %v1514 = vunpack.c.l.b16 %v923
    %v1515 = vunpack.c.l.b16 %v924
    %v1516 = vpack.c.b16 %v1513, %v1512
    %v1517 = vpack.c.b16 %v1515, %v1514
    %v1521 = vsel %vm190, %v1507, 0
    %1523 = vmatprep.subr.bf16.mxu0 0
    %1524 = vmatpush1.bf16.msra.mxu0 %v1516
    %1525 = vmatprep.subr.bf16.mxu0 0
    %1526 = vmatpush1.bf16.msra.mxu0 %v1517
    %1527 = vmatprep.subr.bf16.mxu0 0
    %1528 = vmatpush1.bf16.msra.mxu0 0
    %1529 = vmatprep.subr.bf16.mxu0 0
    %1530 = vmatpush1.bf16.msra.mxu0 0
    %1531 = vmatprep.subr.bf16.mxu0 0
    %1532 = vmatpush1.bf16.msra.mxu0 0
    %1533 = vmatprep.subr.bf16.mxu0 0
    %1534 = vmatpush1.bf16.msra.mxu0 0
    %1535 = vmatprep.subr.bf16.mxu0 0
    %1536 = vmatpush1.bf16.msra.mxu0 0
    %1537 = vmatprep.subr.bf16.mxu0 0
    %1538 = vmatpush1.bf16.msra.mxu0 0
    %1539 = vmatprep.subr.bf16.mxu0 0
    %1540 = vmatpush1.bf16.msra.mxu0 0
    %1541 = vmatprep.subr.bf16.mxu0 0
    %1542 = vmatpush1.bf16.msra.mxu0 0
    %1543 = vmatprep.subr.bf16.mxu0 0
    %1544 = vmatpush1.bf16.msra.mxu0 0
    %1545 = vmatprep.subr.bf16.mxu0 0
    %1546 = vmatpush1.bf16.msra.mxu0 0
    %1547 = vmatprep.subr.bf16.mxu0 0
    %1548 = vmatpush1.bf16.msra.mxu0 0
    %1549 = vmatprep.subr.bf16.mxu0 0
    %1550 = vmatpush1.bf16.msra.mxu0 0
    %1551 = vmatprep.subr.bf16.mxu0 0
    %1552 = vmatpush1.bf16.msra.mxu0 0
    %1553 = vmatprep.subr.bf16.mxu0 0
    %1554 = vmatpush1.bf16.msra.mxu0 0
    %1555 = vmatprep.mubr.bf16.mxu0 0
    %1556 = vmatmul.mubr.bf16.gmra.mrb[0].mxu0 %v1521
    %v1557 = vpop.f32.mrb[0].mxu0
    %v1558 = vadd.f32 0.0, %v1557
    %v1559 = vpop.f32.mrb[0].mxu0
    %v1560 = vpop.f32.mrb[0].mxu0
    %v1561 = vpop.f32.mrb[0].mxu0
    %1562 = vdwg.mxu0
    %v1563 = vxor.u32 %v1558, 2147483648
    %v1564 = vmul.f32 %v1563, 1.442695
    %v1565 = vpow.pop %v1564
    %v1566 = vadd.f32 %v1565, 1.0
    %v1567 = vrcp.pop %v1566
    %v1568 = vmul.f32 1.0, %v1567
    %v1569 = vmul.f32 %v1558, %v1568
    %1571 = vrot.lane.b32.xlu0 %v1558, 64
    %v1572 = vpop.permute.xlu0 %1571
    %v1574 = vmul.f32 %v1569, %v1572
    %v1575 = vpack.c.bf16 %v1574, %v1574
    %v1584 = vunpack.c.l.b16 %v926
    %v1585 = vunpack.c.l.b16 %v927
    %v1586 = vunpack.c.l.b16 %v928
    %v1587 = vunpack.c.l.b16 %v929
    %v1588 = vunpack.c.l.b16 %v930
    %v1589 = vunpack.c.l.b16 %v931
    %v1590 = vunpack.c.l.b16 %v932
    %v1591 = vunpack.c.l.b16 %v933
    %v1592 = vpack.c.b16 %v1585, %v1584
    %v1593 = vpack.c.b16 %v1587, %v1586
    %v1594 = vpack.c.b16 %v1589, %v1588
    %v1595 = vpack.c.b16 %v1591, %v1590
    %v1601 = vsel %vm865, %v1575, 0
    %1603 = vmatprep.subr.bf16.mxu0 0
    %1604 = vmatpush1.bf16.msra.mxu0 %v1592
    %1605 = vmatprep.subr.bf16.mxu0 0
    %1606 = vmatpush1.bf16.msra.mxu0 %v1593
    %1607 = vmatprep.subr.bf16.mxu0 0
    %1608 = vmatpush1.bf16.msra.mxu0 %v1594
    %1609 = vmatprep.subr.bf16.mxu0 0
    %1610 = vmatpush1.bf16.msra.mxu0 %v1595
    %1611 = vmatprep.subr.bf16.mxu0 0
    %1612 = vmatpush1.bf16.msra.mxu0 0
    %1613 = vmatprep.subr.bf16.mxu0 0
    %1614 = vmatpush1.bf16.msra.mxu0 0
    %1615 = vmatprep.subr.bf16.mxu0 0
    %1616 = vmatpush1.bf16.msra.mxu0 0
    %1617 = vmatprep.subr.bf16.mxu0 0
    %1618 = vmatpush1.bf16.msra.mxu0 0
    %1619 = vmatprep.subr.bf16.mxu0 0
    %1620 = vmatpush1.bf16.msra.mxu0 0
    %1621 = vmatprep.subr.bf16.mxu0 0
    %1622 = vmatpush1.bf16.msra.mxu0 0
    %1623 = vmatprep.subr.bf16.mxu0 0
    %1624 = vmatpush1.bf16.msra.mxu0 0
    %1625 = vmatprep.subr.bf16.mxu0 0
    %1626 = vmatpush1.bf16.msra.mxu0 0
    %1627 = vmatprep.subr.bf16.mxu0 0
    %1628 = vmatpush1.bf16.msra.mxu0 0
    %1629 = vmatprep.subr.bf16.mxu0 0
    %1630 = vmatpush1.bf16.msra.mxu0 0
    %1631 = vmatprep.subr.bf16.mxu0 0
    %1632 = vmatpush1.bf16.msra.mxu0 0
    %1633 = vmatprep.subr.bf16.mxu0 0
    %1634 = vmatpush1.bf16.msra.mxu0 0
    %1635 = vmatprep.mubr.bf16.mxu0 0
    %1636 = vmatmul.mubr.bf16.gmra.mrb[0].mxu0 %v1601
    %v1637 = vpop.f32.mrb[0].mxu0
    %v1638 = vadd.f32 0.0, %v1637
    %v1639 = vpop.f32.mrb[0].mxu0
    %v1640 = vpop.f32.mrb[0].mxu0
    %v1641 = vpop.f32.mrb[0].mxu0
    %1642 = vdwg.mxu0
    %v1643 = vadd.f32 %v1491, %v1638
    %1644 = vst.msk [vmem:[#allocation2] sm:$0xff] %vm190, %v1643
    // Predicated region
    $region50: #{llama_part1_forward.1} parent=1 // pred_check
      _
    $region51: #{llama_part1_forward.1} parent=1 // pred_check_branch
      %1646 = sbr.rel (0) target = $region53
    $region52: #{llama_part1_forward.1} parent=1 // pred_region
      %s1648 = ssub.s32 128, 128
      %1649 = vsyncadd [#allocation3], %s1648
      %s1651 = sshll.u32 [#allocation2], 4
      %s1652 = int_to_ptr.vmem [resolvable:$true] %s1651
      %1654 = dma.vmem_to_hbm [thread:$0]  %s1652, 128, %s12, [#allocation3]
    $region53: #{llama_part1_forward.1} parent=1 // pred_fallthru
      _
    // Predicated region
    $region54: #{llama_part1_forward.1} parent=1 // pred_check
      _
    $region55: #{llama_part1_forward.1} parent=1 // pred_check_branch
      %1656 = sbr.rel (0) target = $region57
    $region56: #{llama_part1_forward.1} parent=1 // pred_region
      %1657 = dma.done [#allocation3], 128
    $region57: #{llama_part1_forward.1} parent=1 // pred_fallthru
      _
    %1658 = vsyncpa [#allocation3], 1

</llo_original>
